<compile_context>
chip_gen: v6e
topology: v6e:2x2x1
jax: 0.10.0
libtpu: 0.0.40
codegen_flags: <defaults>
</compile_context>

<pallas_src>
import functools
import math

import jax
import jax.numpy as jnp
from jax.experimental import pallas as pl
from jax.experimental.pallas import tpu as pltpu


# ----------------------------------------------------------------------------------------------
# in-kernel helpers
# ----------------------------------------------------------------------------------------------
def _layernorm(x, g, b, eps=1e-5):
    mu = jnp.mean(x, axis=-1, keepdims=True)
    xc = x - mu
    var = jnp.mean(xc * xc, axis=-1, keepdims=True)
    return xc * jax.lax.rsqrt(var + eps) * g + b


def _elu1(x):
    # elu(x) + 1  ==  x + 1 (x > 0)  else exp(x)
    return jnp.where(x > 0, x + 1.0, jnp.exp(x))


def _linear_attention(q_flat, k3, v3, w_merge, mask_bf, B, L, eps=1e-6):
    """Head-vectorized linear attention (elu feature map) + merge projection, masks=None.

    q_flat : [B*L, C] fp32 projected queries (pre feature map)
    k3, v3 : [B, T, C] fp32 projected keys / values
    w_merge: [C, C] bf16;  mask_bf: [C, C] bf16 block-diagonal (same-head) mask.
    Returns [B*L, C] fp32.  Mathematically identical to the per-head einsum formulation:
        KV = einsum('bthd,bthv->bhdv', elu(K)+1, V/T)
        Z  = 1 / (einsum('blhd,bhd->blh', elu(Q)+1, sum_t(elu(K)+1)) + eps)
        out = merge(einsum('blhd,bhdv,blh->blhv', elu(Q)+1, KV, Z) * T)
    """
    T = k3.shape[1]
    C = k3.shape[2]
    bf = jnp.bfloat16

    qf3 = _elu1(q_flat).reshape(B, L, C)
    kf3 = _elu1(k3)

    # per-sample all-head KV in one batched full-depth contraction, then block-diagonal mask
    kv = jnp.einsum('btc,btv->bcv', kf3.astype(bf), (v3 * (1.0 / T)).astype(bf),
                    preferred_element_type=jnp.float32)            # [B, C, C]
    kv_bf = kv.astype(bf) * mask_bf                                # mask is exact 0/1

    # per-head normalizer, broadcast across each head's channels via the mask matmul
    ksum = jnp.sum(kf3, axis=1)                                    # [B, C]
    qks = (qf3 * ksum[:, None, :]).reshape(B * L, C)
    denom = jnp.dot(qks.astype(bf), mask_bf,
                    preferred_element_type=jnp.float32)            # [B*L, C]
    zs = pl.reciprocal(denom + eps, approx=True) * float(T)        # EUP reciprocal, *T folded in

    msg = jnp.einsum('blc,bcv->blv', qf3.astype(bf), kv_bf,
                     preferred_element_type=jnp.float32).reshape(B * L, C)
    # merge projection: one [B*L, C] @ [C, C] matmul
    return jnp.dot((msg * zs).astype(bf), w_merge, preferred_element_type=jnp.float32)


# ----------------------------------------------------------------------------------------------
# fused DecoderLayer kernel (one grid step == B batch samples)
# ----------------------------------------------------------------------------------------------
def _decoder_layer_kernel(*refs, has_tpos, has_mpos):
    it = iter(refs)
    tgt_ref = next(it)
    mem_ref = next(it)
    tpos_ref = next(it) if has_tpos else None
    mpos_ref = next(it) if has_mpos else None
    mask_ref = next(it)
    ln_ref = next(it)
    ab_ref = next(it)
    wqk_s_ref = next(it)
    wv_s_ref = next(it)
    wmg_s_ref = next(it)
    wq_c_ref = next(it)
    wk_c_ref = next(it)
    wv_c_ref = next(it)
    wmg_c_ref = next(it)
    wm1_ref = next(it)
    wm2_ref = next(it)
    out_ref = next(it)
    assert next(it, None) is None

    B, L, C = tgt_ref.shape
    S = mem_ref.shape[1]
    BL = B * L
    bf = jnp.bfloat16

    tgt = tgt_ref[...].reshape(BL, C)                  # [B*L, C] fp32 token slab
    mem_flat = mem_ref[...].reshape(B * S, C)          # [B*S, C] fp32 memory slab
    mask_bf = mask_ref[...].astype(bf)                 # [C, C] block-diagonal head mask (precomputed)

    lnp = ln_ref[...]                                  # [6, C] fp32: g1,b1,g2,b2,g3,b3
    g1, b1, g2, b2, g3, b3 = (lnp[i:i + 1] for i in range(6))
    ab = ab_ref[...]                                   # [6, C] fp32: bq_s,bk_s,bv_s,bq_c,bk_c,bv_c
    bq_s, bk_s, bv_s, bq_c, bk_c, bv_c = (ab[i:i + 1] for i in range(6))

    tpos = None
    if has_tpos:                                       # hoisted, reused by self- and cross-attn
        tpos = jnp.broadcast_to(tpos_ref[...][None], (B, L, C)).reshape(BL, C)

    # ---- self attention:  q = k = norm1(tgt) + tgt_pos,  v = norm1(tgt) ----
    t2 = _layernorm(tgt, g1, b1)
    qk_in = t2 + tpos if has_tpos else t2
    QK = jnp.dot(qk_in.astype(bf), wqk_s_ref[...].astype(bf),
                 preferred_element_type=jnp.float32)   # fused Q/K projection [B*L, 2C]
    Q = QK[:, :C] + bq_s
    K = QK[:, C:] + bk_s
    V = jnp.dot(t2.astype(bf), wv_s_ref[...].astype(bf),
                preferred_element_type=jnp.float32) + bv_s
    tgt = tgt + _linear_attention(Q, K.reshape(B, L, C), V.reshape(B, L, C),
                                  wmg_s_ref[...].astype(bf), mask_bf, B, L)

    # ---- cross attention:  q = norm2(tgt) + tgt_pos,  k = memory + m_pos,  v = memory ----
    t2 = _layernorm(tgt, g2, b2)
    q_in = t2 + tpos if has_tpos else t2
    if has_mpos:
        k_in = mem_flat + jnp.broadcast_to(mpos_ref[...][None], (B, S, C)).reshape(B * S, C)
    else:
        k_in = mem_flat
    Q = jnp.dot(q_in.astype(bf), wq_c_ref[...].astype(bf),
                preferred_element_type=jnp.float32) + bq_c
    K = jnp.dot(k_in.astype(bf), wk_c_ref[...].astype(bf),
                preferred_element_type=jnp.float32) + bk_c
    V = jnp.dot(mem_flat.astype(bf), wv_c_ref[...].astype(bf),
                preferred_element_type=jnp.float32) + bv_c
    tgt = tgt + _linear_attention(Q, K.reshape(B, S, C), V.reshape(B, S, C),
                                  wmg_c_ref[...].astype(bf), mask_bf, B, L)

    # ---- MLP: Linear(C, 2C, no bias) -> ReLU -> Linear(2C, C, no bias) ----
    t2 = _layernorm(tgt, g3, b3)
    h = jnp.maximum(jnp.dot(t2.astype(bf), wm1_ref[...].astype(bf),
                            preferred_element_type=jnp.float32), 0.0)
    y = jnp.dot(h.astype(bf), wm2_ref[...].astype(bf), preferred_element_type=jnp.float32)

    out_ref[...] = (tgt + y).reshape(B, L, C)


# ----------------------------------------------------------------------------------------------
# pallas_call plumbing
# ----------------------------------------------------------------------------------------------
_SHARED_KEYS = ("ln_gb", "attn_b",
                "w_qk_s", "w_v_s", "w_merge_s",
                "w_q_c", "w_k_c", "w_v_c", "w_merge_c",
                "w_mlp1", "w_mlp2")


def _rep_spec(shape):
    nd = len(shape)
    return pl.BlockSpec(tuple(shape), lambda n, _nd=nd: (0,) * _nd)


def _vmem_estimate_bytes(B, L, S, C):
    f32, bf16 = 4, 2
    blocks = (2 * B * L * C + B * S * C) * f32                       # tgt / out / mem blocks
    io = 2 * blocks                                                  # double-buffered pipeline
    weights = 2 * (13 * C * C * bf16 + (12 + L + S) * C * f32)       # bf16 mats + mask + vectors/pos
    temps = 24 * B * L * C * f32 + 10 * B * S * C * f32 + 6 * B * C * C * f32  # generous
    return io + weights + temps


def _vmem_limit_bytes(B, L, S, C):
    est = _vmem_estimate_bytes(B, L, S, C)
    # 2x headroom; clamp to [32 MiB, 64 MiB] so the same setting also fits v7x (64 MiB VMEM).
    return int(min(64 * 1024 * 1024, max(32 * 1024 * 1024, 2 * est)))


def _pick_block_batch(N, L, S, C, budget_bytes=40 * 1024 * 1024):
    """Largest divisor B of N with <=256 token rows per step (fill the MXU) and a bounded VMEM
    footprint; prefer >= 2 grid steps when N >= 2 so both v7x TensorCores get work."""
    best = 1
    for b in range(1, N + 1):
        if N % b != 0:
            continue
        if b * L > 256 or _vmem_estimate_bytes(b, L, S, C) > budget_bytes:
            break
        best = b
    if N >= 2 and N // best < 2:
        for b in range(best - 1, 0, -1):
            if N % b == 0 and N // b >= 2:
                return b
    return best


def _head_block_mask_bf16(C, nhead):
    # [C, C] bf16, 1 where row and column channel belong to the same head, else 0 (exact in bf16)
    dh = C // nhead
    r = jnp.arange(C, dtype=jnp.int32)[:, None] // dh
    c = jnp.arange(C, dtype=jnp.int32)[None, :] // dh
    return (r == c).astype(jnp.bfloat16)


def decoder_layer_forward(params, tgt, memory, tgt_pos=None, m_pos=None, *,
                          nhead, block_batch=None):
    """tgt [N, L, C], memory [N, S, C]; tgt_pos / m_pos optional, broadcastable to [1, L, C] /
    [1, S, C] (batch-independent positional embeddings).  Returns [N, L, C] fp32."""
    N, L, C = tgt.shape
    S = memory.shape[1]
    assert C % nhead == 0

    B = _pick_block_batch(N, L, S, C) if block_batch is None else block_batch
    assert N % B == 0, (N, B)
    grid = (N // B,)

    has_tpos = tgt_pos is not None
    has_mpos = m_pos is not None

    batched = [tgt.astype(jnp.float32), memory.astype(jnp.float32)]
    in_specs = [pl.BlockSpec((B, L, C), lambda n: (n, 0, 0)),
                pl.BlockSpec((B, S, C), lambda n: (n, 0, 0))]

    rep = []
    if has_tpos:
        # TODO(synk): batch-dependent tgt_pos (leading batch dim > 1) would need a batched input.
        rep.append(jnp.broadcast_to(jnp.asarray(tgt_pos, jnp.float32), (1, L, C)).reshape(L, C))
    if has_mpos:
        rep.append(jnp.broadcast_to(jnp.asarray(m_pos, jnp.float32), (1, S, C)).reshape(S, C))
    rep.append(_head_block_mask_bf16(C, nhead))
    rep.extend(params[k] for k in _SHARED_KEYS)
    in_specs += [_rep_spec(a.shape) for a in rep]

    kernel = functools.partial(_decoder_layer_kernel, has_tpos=has_tpos, has_mpos=has_mpos)

    return pl.pallas_call(
        kernel,
        grid=grid,
        in_specs=in_specs,
        out_specs=pl.BlockSpec((B, L, C), lambda n: (n, 0, 0)),
        out_shape=jax.ShapeDtypeStruct((N, L, C), jnp.float32),
        compiler_params=pltpu.CompilerParams(
            dimension_semantics=("parallel",),
            vmem_limit_bytes=_vmem_limit_bytes(B, L, S, C)),
    )(*batched, *rep)


# ----------------------------------------------------------------------------------------------
# parameters (weights stored [in, out] == nn.Linear W.T; fused [Wq | Wk] for self-attention;
# LayerNorm g/b and attention biases row-stacked into [6, C] arrays)
# ----------------------------------------------------------------------------------------------
def _uniform(key, shape, bound):
    return jax.random.uniform(key, shape, jnp.float32, -bound, bound)


def init_decoder_params(key, C):
    ks = jax.random.split(key, 16)
    bC = 1.0 / math.sqrt(C)
    b2C = 1.0 / math.sqrt(2 * C)
    ones, zeros = jnp.ones((C,), jnp.float32), jnp.zeros((C,), jnp.float32)
    return {
        # rows: g1, b1, g2, b2, g3, b3
        "ln_gb": jnp.stack([ones, zeros, ones, zeros, ones, zeros]),
        # rows: b_q_self, b_k_self, b_v_self, b_q_cross, b_k_cross, b_v_cross
        "attn_b": jnp.stack([_uniform(ks[i], (C,), bC) for i in range(6)]),
        # self attention (q_proj and k_proj fused along the output dim)
        "w_qk_s": _uniform(ks[6], (C, 2 * C), bC),
        "w_v_s": _uniform(ks[7], (C, C), bC),
        "w_merge_s": _uniform(ks[8], (C, C), bC),
        # cross attention
        "w_q_c": _uniform(ks[9], (C, C), bC),
        "w_k_c": _uniform(ks[10], (C, C), bC),
        "w_v_c": _uniform(ks[11], (C, C), bC),
        "w_merge_c": _uniform(ks[12], (C, C), bC),
        # MLP (bias-free)
        "w_mlp1": _uniform(ks[13], (C, 2 * C), bC),
        "w_mlp2": _uniform(ks[14], (2 * C, C), b2C),
    }


def cast_weights_bf16(params):
    # weight matrices live in HBM as bf16 (halves weight DMA bytes; MXU-native); norms/biases fp32
    return {k: (v.astype(jnp.bfloat16) if k.startswith("w_") else v) for k, v in params.items()}


# ----------------------------------------------------------------------------------------------
# pure-JAX fp32 reference (mirrors the PyTorch DecoderLayer.forward, eval mode, masks=None)
# ----------------------------------------------------------------------------------------------
def decoder_layer_reference(p, tgt, memory, tgt_pos=None, m_pos=None, *, nhead,
                            ln_eps=1e-5, attn_eps=1e-6):
    N, L, C = tgt.shape
    Dh = C // nhead

    def ln(x, g, b):
        mu = jnp.mean(x, -1, keepdims=True)
        var = jnp.mean((x - mu) ** 2, -1, keepdims=True)
        return (x - mu) * jax.lax.rsqrt(var + ln_eps) * g + b

    def lin_attn(Q, K, V):
        T = V.shape[1]
        Qf = jax.nn.elu(Q.reshape(N, -1, nhead, Dh)) + 1.0
        Kf = jax.nn.elu(K.reshape(N, -1, nhead, Dh)) + 1.0
        Vn = V.reshape(N, -1, nhead, Dh) / T
        KV = jnp.einsum('nshd,nshv->nhdv', Kf, Vn)
        Z = 1.0 / (jnp.einsum('nlhd,nhd->nlh', Qf, Kf.sum(axis=1)) + attn_eps)
        out = jnp.einsum('nlhd,nhdv,nlh->nlhv', Qf, KV, Z) * T
        return out.reshape(N, -1, C)

    g1, b1, g2, b2, g3, b3 = (p["ln_gb"][i] for i in range(6))
    bq_s, bk_s, bv_s, bq_c, bk_c, bv_c = (p["attn_b"][i] for i in range(6))
    tpos = 0.0 if tgt_pos is None else tgt_pos
    mpos = 0.0 if m_pos is None else m_pos

    # self attention
    t2 = ln(tgt, g1, b1)
    qk = t2 + tpos
    Q = qk @ p["w_qk_s"][:, :C] + bq_s
    K = qk @ p["w_qk_s"][:, C:] + bk_s
    V = t2 @ p["w_v_s"] + bv_s
    tgt = tgt + lin_attn(Q, K, V) @ p["w_merge_s"]
    # cross attention
    t2 = ln(tgt, g2, b2)
    Q = (t2 + tpos) @ p["w_q_c"] + bq_c
    K = (memory + mpos) @ p["w_k_c"] + bk_c
    V = memory @ p["w_v_c"] + bv_c
    tgt = tgt + lin_attn(Q, K, V) @ p["w_merge_c"]
    # MLP
    t2 = ln(tgt, g3, b3)
    return tgt + jnp.maximum(t2 @ p["w_mlp1"], 0.0) @ p["w_mlp2"]


# ----------------------------------------------------------------------------------------------
if __name__ == "__main__":
    # small deterministic configuration (production: d_model=256, nhead=8)
    N, L, S, C, NHEAD = 2, 8, 64, 32, 4

    key = jax.random.PRNGKey(0)
    k_tgt, k_mem, k_pos, k_par = jax.random.split(key, 4)
    tgt = jax.random.normal(k_tgt, (N, L, C), jnp.float32)
    memory = jax.random.normal(k_mem, (N, S, C), jnp.float32)
    tgt_pos = 0.5 * jax.random.normal(k_pos, (1, 1, C), jnp.float32)   # broadcast query embedding

    params = init_decoder_params(k_par, C)
    kparams = cast_weights_bf16(params)

    fwd = jax.jit(functools.partial(decoder_layer_forward, nhead=NHEAD))
    out = jax.block_until_ready(fwd(kparams, tgt, memory, tgt_pos, None))

    assert out.shape == (N, L, C), out.shape
    assert bool(jnp.all(jnp.isfinite(out)))

    # bf16-matmul kernel (+ approx reciprocal) vs fp32 reference: loose tolerance
    ref = decoder_layer_reference(params, tgt, memory, tgt_pos, None, nhead=NHEAD)
    err = float(jnp.max(jnp.abs(out - ref)))
    scale = float(jnp.max(jnp.abs(ref))) + 1e-6
    assert err <= 0.03 * scale + 0.03, (err, scale)

    print("KERNEL_OK")
</pallas_src>

<mosaic_0001>
module attributes {stable_mosaic.version = 11 : i64} {
  func.func @_decoder_layer_kernel(%arg0: i32, %arg1: memref<1x8x32xf32, #tpu.memory_space<vmem>>, %arg2: memref<1x64x32xf32, #tpu.memory_space<vmem>>, %arg3: memref<8x32xf32, #tpu.memory_space<vmem>>, %arg4: memref<32x32xbf16, #tpu.memory_space<vmem>>, %arg5: memref<6x32xf32, #tpu.memory_space<vmem>>, %arg6: memref<6x32xf32, #tpu.memory_space<vmem>>, %arg7: memref<32x64xbf16, #tpu.memory_space<vmem>>, %arg8: memref<32x32xbf16, #tpu.memory_space<vmem>>, %arg9: memref<32x32xbf16, #tpu.memory_space<vmem>>, %arg10: memref<32x32xbf16, #tpu.memory_space<vmem>>, %arg11: memref<32x32xbf16, #tpu.memory_space<vmem>>, %arg12: memref<32x32xbf16, #tpu.memory_space<vmem>>, %arg13: memref<32x32xbf16, #tpu.memory_space<vmem>>, %arg14: memref<32x64xbf16, #tpu.memory_space<vmem>>, %arg15: memref<64x32xbf16, #tpu.memory_space<vmem>>, %arg16: memref<1x8x32xf32, #tpu.memory_space<vmem>>) attributes {dimension_semantics = [#tpu.dimension_semantics<parallel>], iteration_bounds = array<i64: 2>, scalar_prefetch = 0 : i64, scratch_operands = 0 : i64, tpu.core_type = #tpu.core_type<tc>, window_params = [{transform_indices = @transform_0, window_bounds = array<i64: 1, 8, 32>}, {transform_indices = @transform_1, window_bounds = array<i64: 1, 64, 32>}, {pipeline_mode = #tpu.pipeline_mode<synchronous>, transform_indices = @transform_2, window_bounds = array<i64: 8, 32>}, {pipeline_mode = #tpu.pipeline_mode<synchronous>, transform_indices = @transform_3, window_bounds = array<i64: 32, 32>}, {pipeline_mode = #tpu.pipeline_mode<synchronous>, transform_indices = @transform_4, window_bounds = array<i64: 6, 32>}, {pipeline_mode = #tpu.pipeline_mode<synchronous>, transform_indices = @transform_5, window_bounds = array<i64: 6, 32>}, {pipeline_mode = #tpu.pipeline_mode<synchronous>, transform_indices = @transform_6, window_bounds = array<i64: 32, 64>}, {pipeline_mode = #tpu.pipeline_mode<synchronous>, transform_indices = @transform_7, window_bounds = array<i64: 32, 32>}, {pipeline_mode = #tpu.pipeline_mode<synchronous>, transform_indices = @transform_8, window_bounds = array<i64: 32, 32>}, {pipeline_mode = #tpu.pipeline_mode<synchronous>, transform_indices = @transform_9, window_bounds = array<i64: 32, 32>}, {pipeline_mode = #tpu.pipeline_mode<synchronous>, transform_indices = @transform_10, window_bounds = array<i64: 32, 32>}, {pipeline_mode = #tpu.pipeline_mode<synchronous>, transform_indices = @transform_11, window_bounds = array<i64: 32, 32>}, {pipeline_mode = #tpu.pipeline_mode<synchronous>, transform_indices = @transform_12, window_bounds = array<i64: 32, 32>}, {pipeline_mode = #tpu.pipeline_mode<synchronous>, transform_indices = @transform_13, window_bounds = array<i64: 32, 64>}, {pipeline_mode = #tpu.pipeline_mode<synchronous>, transform_indices = @transform_14, window_bounds = array<i64: 64, 32>}, {transform_indices = @transform_15, window_bounds = array<i64: 1, 8, 32>}]} {
    %c0 = arith.constant 0 : index
    %c0_0 = arith.constant 0 : index
    %c0_1 = arith.constant 0 : index
    %0 = vector.load %arg1[%c0, %c0_0, %c0_1] : memref<1x8x32xf32, #tpu.memory_space<vmem>>, vector<1x8x32xf32>
    %1 = vector.shape_cast %0 : vector<1x8x32xf32> to vector<8x32xf32>
    %c0_2 = arith.constant 0 : index
    %c0_3 = arith.constant 0 : index
    %c0_4 = arith.constant 0 : index
    %2 = vector.load %arg2[%c0_2, %c0_3, %c0_4] : memref<1x64x32xf32, #tpu.memory_space<vmem>>, vector<1x64x32xf32>
    %3 = vector.shape_cast %2 : vector<1x64x32xf32> to vector<64x32xf32>
    %c0_5 = arith.constant 0 : index
    %c0_6 = arith.constant 0 : index
    %4 = vector.load %arg4[%c0_5, %c0_6] : memref<32x32xbf16, #tpu.memory_space<vmem>>, vector<32x32xbf16>
    %c0_7 = arith.constant 0 : index
    %c0_8 = arith.constant 0 : index
    %5 = vector.load %arg5[%c0_7, %c0_8] : memref<6x32xf32, #tpu.memory_space<vmem>>, vector<6x32xf32>
    %6 = vector.extract_strided_slice %5 {offsets = [0, 0], sizes = [1, 32], strides = [1, 1]} : vector<6x32xf32> to vector<1x32xf32>
    %7 = vector.extract_strided_slice %5 {offsets = [1, 0], sizes = [1, 32], strides = [1, 1]} : vector<6x32xf32> to vector<1x32xf32>
    %8 = vector.extract_strided_slice %5 {offsets = [2, 0], sizes = [1, 32], strides = [1, 1]} : vector<6x32xf32> to vector<1x32xf32>
    %9 = vector.extract_strided_slice %5 {offsets = [3, 0], sizes = [1, 32], strides = [1, 1]} : vector<6x32xf32> to vector<1x32xf32>
    %10 = vector.extract_strided_slice %5 {offsets = [4, 0], sizes = [1, 32], strides = [1, 1]} : vector<6x32xf32> to vector<1x32xf32>
    %11 = vector.extract_strided_slice %5 {offsets = [5, 0], sizes = [1, 32], strides = [1, 1]} : vector<6x32xf32> to vector<1x32xf32>
    %c0_9 = arith.constant 0 : index
    %c0_10 = arith.constant 0 : index
    %12 = vector.load %arg6[%c0_9, %c0_10] : memref<6x32xf32, #tpu.memory_space<vmem>>, vector<6x32xf32>
    %13 = vector.extract_strided_slice %12 {offsets = [0, 0], sizes = [1, 32], strides = [1, 1]} : vector<6x32xf32> to vector<1x32xf32>
    %14 = vector.extract_strided_slice %12 {offsets = [1, 0], sizes = [1, 32], strides = [1, 1]} : vector<6x32xf32> to vector<1x32xf32>
    %15 = vector.extract_strided_slice %12 {offsets = [2, 0], sizes = [1, 32], strides = [1, 1]} : vector<6x32xf32> to vector<1x32xf32>
    %16 = vector.extract_strided_slice %12 {offsets = [3, 0], sizes = [1, 32], strides = [1, 1]} : vector<6x32xf32> to vector<1x32xf32>
    %17 = vector.extract_strided_slice %12 {offsets = [4, 0], sizes = [1, 32], strides = [1, 1]} : vector<6x32xf32> to vector<1x32xf32>
    %18 = vector.extract_strided_slice %12 {offsets = [5, 0], sizes = [1, 32], strides = [1, 1]} : vector<6x32xf32> to vector<1x32xf32>
    %c0_11 = arith.constant 0 : index
    %c0_12 = arith.constant 0 : index
    %19 = vector.load %arg3[%c0_11, %c0_12] : memref<8x32xf32, #tpu.memory_space<vmem>>, vector<8x32xf32>
    %20 = vector.shape_cast %19 : vector<8x32xf32> to vector<1x8x32xf32>
    %21 = vector.shape_cast %20 : vector<1x8x32xf32> to vector<8x32xf32>
    %cst = arith.constant dense<0.000000e+00> : vector<8xf32>
    %22 = vector.multi_reduction <add>, %1, %cst [1] : vector<8x32xf32> to vector<8xf32>
    %23 = vector.shape_cast %22 : vector<8xf32> to vector<8x1xf32>
    %cst_13 = arith.constant 3.200000e+01 : f32
    %24 = vector.broadcast %cst_13 : f32 to vector<8x1xf32>
    %25 = arith.divf %23, %24 : vector<8x1xf32>
    %26 = vector.broadcast %25 : vector<8x1xf32> to vector<8x32xf32>
    %27 = arith.subf %1, %26 : vector<8x32xf32>
    %28 = arith.mulf %27, %27 : vector<8x32xf32>
    %cst_14 = arith.constant dense<0.000000e+00> : vector<8xf32>
    %29 = vector.multi_reduction <add>, %28, %cst_14 [1] : vector<8x32xf32> to vector<8xf32>
    %30 = vector.shape_cast %29 : vector<8xf32> to vector<8x1xf32>
    %cst_15 = arith.constant 3.200000e+01 : f32
    %31 = vector.broadcast %cst_15 : f32 to vector<8x1xf32>
    %32 = arith.divf %30, %31 : vector<8x1xf32>
    %cst_16 = arith.constant 9.99999974E-6 : f32
    %33 = vector.broadcast %cst_16 : f32 to vector<8x1xf32>
    %34 = arith.addf %32, %33 : vector<8x1xf32>
    %35 = math.rsqrt %34 : vector<8x1xf32>
    %36 = vector.broadcast %35 : vector<8x1xf32> to vector<8x32xf32>
    %37 = arith.mulf %27, %36 : vector<8x32xf32>
    %38 = vector.broadcast %6 : vector<1x32xf32> to vector<8x32xf32>
    %39 = arith.mulf %37, %38 : vector<8x32xf32>
    %40 = vector.broadcast %7 : vector<1x32xf32> to vector<8x32xf32>
    %41 = arith.addf %39, %40 : vector<8x32xf32>
    %42 = arith.addf %41, %21 : vector<8x32xf32>
    %43 = arith.truncf %42 : vector<8x32xf32> to vector<8x32xbf16>
    %c0_17 = arith.constant 0 : index
    %c0_18 = arith.constant 0 : index
    %44 = vector.load %arg7[%c0_17, %c0_18] : memref<32x64xbf16, #tpu.memory_space<vmem>>, vector<32x64xbf16>
    %cst_19 = arith.constant dense<0.000000e+00> : vector<8x64xf32>
    %45 = tpu.matmul %43, %44, %cst_19 {dimension_numbers = #tpu.dot_dimension_numbers<[1], [0], [0], [1], [0, 0, 1, 1], [], []>} : vector<8x32xbf16>, vector<32x64xbf16>, vector<8x64xf32> -> vector<8x64xf32>
    %46 = vector.extract_strided_slice %45 {offsets = [0, 0], sizes = [8, 32], strides = [1, 1]} : vector<8x64xf32> to vector<8x32xf32>
    %47 = vector.broadcast %13 : vector<1x32xf32> to vector<8x32xf32>
    %48 = arith.addf %46, %47 : vector<8x32xf32>
    %49 = vector.extract_strided_slice %45 {offsets = [0, 32], sizes = [8, 32], strides = [1, 1]} : vector<8x64xf32> to vector<8x32xf32>
    %50 = vector.broadcast %14 : vector<1x32xf32> to vector<8x32xf32>
    %51 = arith.addf %49, %50 : vector<8x32xf32>
    %52 = arith.truncf %41 : vector<8x32xf32> to vector<8x32xbf16>
    %c0_20 = arith.constant 0 : index
    %c0_21 = arith.constant 0 : index
    %53 = vector.load %arg8[%c0_20, %c0_21] : memref<32x32xbf16, #tpu.memory_space<vmem>>, vector<32x32xbf16>
    %cst_22 = arith.constant dense<0.000000e+00> : vector<8x32xf32>
    %54 = tpu.matmul %52, %53, %cst_22 {dimension_numbers = #tpu.dot_dimension_numbers<[1], [0], [0], [1], [0, 0, 1, 1], [], []>} : vector<8x32xbf16>, vector<32x32xbf16>, vector<8x32xf32> -> vector<8x32xf32>
    %55 = vector.broadcast %15 : vector<1x32xf32> to vector<8x32xf32>
    %56 = arith.addf %54, %55 : vector<8x32xf32>
    %57 = vector.shape_cast %51 : vector<8x32xf32> to vector<1x8x32xf32>
    %58 = vector.shape_cast %56 : vector<8x32xf32> to vector<1x8x32xf32>
    %c0_23 = arith.constant 0 : index
    %c0_24 = arith.constant 0 : index
    %59 = vector.load %arg9[%c0_23, %c0_24] : memref<32x32xbf16, #tpu.memory_space<vmem>>, vector<32x32xbf16>
    %cst_25 = arith.constant 0.000000e+00 : f32
    %60 = vector.broadcast %cst_25 : f32 to vector<8x32xf32>
    %61 = arith.cmpf ogt, %48, %60 : vector<8x32xf32>
    %cst_26 = arith.constant 1.000000e+00 : f32
    %62 = vector.broadcast %cst_26 : f32 to vector<8x32xf32>
    %63 = arith.addf %48, %62 : vector<8x32xf32>
    %64 = math.exp %48 : vector<8x32xf32>
    %65 = arith.select %61, %63, %64 : vector<8x32xi1>, vector<8x32xf32>
    %66 = vector.shape_cast %65 : vector<8x32xf32> to vector<1x8x32xf32>
    %cst_27 = arith.constant 0.000000e+00 : f32
    %67 = vector.broadcast %cst_27 : f32 to vector<1x8x32xf32>
    %68 = arith.cmpf ogt, %57, %67 : vector<1x8x32xf32>
    %cst_28 = arith.constant 1.000000e+00 : f32
    %69 = vector.broadcast %cst_28 : f32 to vector<1x8x32xf32>
    %70 = arith.addf %57, %69 : vector<1x8x32xf32>
    %71 = math.exp %57 : vector<1x8x32xf32>
    %72 = arith.select %68, %70, %71 : vector<1x8x32xi1>, vector<1x8x32xf32>
    %73 = arith.truncf %72 : vector<1x8x32xf32> to vector<1x8x32xbf16>
    %cst_29 = arith.constant 1.250000e-01 : f32
    %74 = vector.broadcast %cst_29 : f32 to vector<1x8x32xf32>
    %75 = arith.mulf %58, %74 : vector<1x8x32xf32>
    %76 = arith.truncf %75 : vector<1x8x32xf32> to vector<1x8x32xbf16>
    "tpu.trace_start"() <{level = 10 : i32, message = "btc,btv->bcv"}> : () -> ()
    %cst_30 = arith.constant dense<0.000000e+00> : vector<1x32x32xf32>
    %77 = tpu.matmul %73, %76, %cst_30 {dimension_numbers = #tpu.dot_dimension_numbers<[1], [1], [2], [2], [0, 0, 0, 2, 1, 2], [0], [0]>} : vector<1x8x32xbf16>, vector<1x8x32xbf16>, vector<1x32x32xf32> -> vector<1x32x32xf32>
    "tpu.trace_stop"() : () -> ()
    %78 = arith.truncf %77 : vector<1x32x32xf32> to vector<1x32x32xbf16>
    %79 = vector.shape_cast %4 : vector<32x32xbf16> to vector<1x32x32xbf16>
    %80 = arith.mulf %78, %79 : vector<1x32x32xbf16>
    %cst_31 = arith.constant dense<0.000000e+00> : vector<1x32xf32>
    %81 = vector.multi_reduction <add>, %72, %cst_31 [1] : vector<1x8x32xf32> to vector<1x32xf32>
    %82 = vector.shape_cast %81 : vector<1x32xf32> to vector<1x1x32xf32>
    %83 = vector.broadcast %82 : vector<1x1x32xf32> to vector<1x8x32xf32>
    %84 = arith.mulf %66, %83 : vector<1x8x32xf32>
    %85 = vector.shape_cast %84 : vector<1x8x32xf32> to vector<8x32xf32>
    %86 = arith.truncf %85 : vector<8x32xf32> to vector<8x32xbf16>
    %cst_32 = arith.constant dense<0.000000e+00> : vector<8x32xf32>
    %87 = tpu.matmul %86, %4, %cst_32 {dimension_numbers = #tpu.dot_dimension_numbers<[1], [0], [0], [1], [0, 0, 1, 1], [], []>} : vector<8x32xbf16>, vector<32x32xbf16>, vector<8x32xf32> -> vector<8x32xf32>
    %cst_33 = arith.constant 9.99999997E-7 : f32
    %88 = vector.broadcast %cst_33 : f32 to vector<8x32xf32>
    %89 = arith.addf %87, %88 : vector<8x32xf32>
    %90 = tpu.reciprocal %89 {approx = true} : vector<8x32xf32> -> vector<8x32xf32>
    %cst_34 = arith.constant 8.000000e+00 : f32
    %91 = vector.broadcast %cst_34 : f32 to vector<8x32xf32>
    %92 = arith.mulf %90, %91 : vector<8x32xf32>
    %93 = arith.truncf %66 : vector<1x8x32xf32> to vector<1x8x32xbf16>
    "tpu.trace_start"() <{level = 10 : i32, message = "blc,bcv->blv"}> : () -> ()
    %cst_35 = arith.constant dense<0.000000e+00> : vector<1x8x32xf32>
    %94 = tpu.matmul %93, %80, %cst_35 {dimension_numbers = #tpu.dot_dimension_numbers<[2], [1], [1], [2], [0, 0, 0, 1, 1, 2], [0], [0]>} : vector<1x8x32xbf16>, vector<1x32x32xbf16>, vector<1x8x32xf32> -> vector<1x8x32xf32>
    "tpu.trace_stop"() : () -> ()
    %95 = vector.shape_cast %94 : vector<1x8x32xf32> to vector<8x32xf32>
    %96 = arith.mulf %95, %92 : vector<8x32xf32>
    %97 = arith.truncf %96 : vector<8x32xf32> to vector<8x32xbf16>
    %cst_36 = arith.constant dense<0.000000e+00> : vector<8x32xf32>
    %98 = tpu.matmul %97, %59, %cst_36 {dimension_numbers = #tpu.dot_dimension_numbers<[1], [0], [0], [1], [0, 0, 1, 1], [], []>} : vector<8x32xbf16>, vector<32x32xbf16>, vector<8x32xf32> -> vector<8x32xf32>
    %99 = arith.addf %1, %98 : vector<8x32xf32>
    %cst_37 = arith.constant dense<0.000000e+00> : vector<8xf32>
    %100 = vector.multi_reduction <add>, %99, %cst_37 [1] : vector<8x32xf32> to vector<8xf32>
    %101 = vector.shape_cast %100 : vector<8xf32> to vector<8x1xf32>
    %cst_38 = arith.constant 3.200000e+01 : f32
    %102 = vector.broadcast %cst_38 : f32 to vector<8x1xf32>
    %103 = arith.divf %101, %102 : vector<8x1xf32>
    %104 = vector.broadcast %103 : vector<8x1xf32> to vector<8x32xf32>
    %105 = arith.subf %99, %104 : vector<8x32xf32>
    %106 = arith.mulf %105, %105 : vector<8x32xf32>
    %cst_39 = arith.constant dense<0.000000e+00> : vector<8xf32>
    %107 = vector.multi_reduction <add>, %106, %cst_39 [1] : vector<8x32xf32> to vector<8xf32>
    %108 = vector.shape_cast %107 : vector<8xf32> to vector<8x1xf32>
    %cst_40 = arith.constant 3.200000e+01 : f32
    %109 = vector.broadcast %cst_40 : f32 to vector<8x1xf32>
    %110 = arith.divf %108, %109 : vector<8x1xf32>
    %cst_41 = arith.constant 9.99999974E-6 : f32
    %111 = vector.broadcast %cst_41 : f32 to vector<8x1xf32>
    %112 = arith.addf %110, %111 : vector<8x1xf32>
    %113 = math.rsqrt %112 : vector<8x1xf32>
    %114 = vector.broadcast %113 : vector<8x1xf32> to vector<8x32xf32>
    %115 = arith.mulf %105, %114 : vector<8x32xf32>
    %116 = vector.broadcast %8 : vector<1x32xf32> to vector<8x32xf32>
    %117 = arith.mulf %115, %116 : vector<8x32xf32>
    %118 = vector.broadcast %9 : vector<1x32xf32> to vector<8x32xf32>
    %119 = arith.addf %117, %118 : vector<8x32xf32>
    %120 = arith.addf %119, %21 : vector<8x32xf32>
    %121 = arith.truncf %120 : vector<8x32xf32> to vector<8x32xbf16>
    %c0_42 = arith.constant 0 : index
    %c0_43 = arith.constant 0 : index
    %122 = vector.load %arg10[%c0_42, %c0_43] : memref<32x32xbf16, #tpu.memory_space<vmem>>, vector<32x32xbf16>
    %cst_44 = arith.constant dense<0.000000e+00> : vector<8x32xf32>
    %123 = tpu.matmul %121, %122, %cst_44 {dimension_numbers = #tpu.dot_dimension_numbers<[1], [0], [0], [1], [0, 0, 1, 1], [], []>} : vector<8x32xbf16>, vector<32x32xbf16>, vector<8x32xf32> -> vector<8x32xf32>
    %124 = vector.broadcast %16 : vector<1x32xf32> to vector<8x32xf32>
    %125 = arith.addf %123, %124 : vector<8x32xf32>
    %126 = arith.truncf %3 : vector<64x32xf32> to vector<64x32xbf16>
    %c0_45 = arith.constant 0 : index
    %c0_46 = arith.constant 0 : index
    %127 = vector.load %arg11[%c0_45, %c0_46] : memref<32x32xbf16, #tpu.memory_space<vmem>>, vector<32x32xbf16>
    %cst_47 = arith.constant dense<0.000000e+00> : vector<64x32xf32>
    %128 = tpu.matmul %126, %127, %cst_47 {dimension_numbers = #tpu.dot_dimension_numbers<[1], [0], [0], [1], [0, 0, 1, 1], [], []>} : vector<64x32xbf16>, vector<32x32xbf16>, vector<64x32xf32> -> vector<64x32xf32>
    %129 = vector.broadcast %17 : vector<1x32xf32> to vector<64x32xf32>
    %130 = arith.addf %128, %129 : vector<64x32xf32>
    %131 = arith.truncf %3 : vector<64x32xf32> to vector<64x32xbf16>
    %c0_48 = arith.constant 0 : index
    %c0_49 = arith.constant 0 : index
    %132 = vector.load %arg12[%c0_48, %c0_49] : memref<32x32xbf16, #tpu.memory_space<vmem>>, vector<32x32xbf16>
    %cst_50 = arith.constant dense<0.000000e+00> : vector<64x32xf32>
    %133 = tpu.matmul %131, %132, %cst_50 {dimension_numbers = #tpu.dot_dimension_numbers<[1], [0], [0], [1], [0, 0, 1, 1], [], []>} : vector<64x32xbf16>, vector<32x32xbf16>, vector<64x32xf32> -> vector<64x32xf32>
    %134 = vector.broadcast %18 : vector<1x32xf32> to vector<64x32xf32>
    %135 = arith.addf %133, %134 : vector<64x32xf32>
    %136 = vector.shape_cast %130 : vector<64x32xf32> to vector<1x64x32xf32>
    %137 = vector.shape_cast %135 : vector<64x32xf32> to vector<1x64x32xf32>
    %c0_51 = arith.constant 0 : index
    %c0_52 = arith.constant 0 : index
    %138 = vector.load %arg13[%c0_51, %c0_52] : memref<32x32xbf16, #tpu.memory_space<vmem>>, vector<32x32xbf16>
    %cst_53 = arith.constant 0.000000e+00 : f32
    %139 = vector.broadcast %cst_53 : f32 to vector<8x32xf32>
    %140 = arith.cmpf ogt, %125, %139 : vector<8x32xf32>
    %cst_54 = arith.constant 1.000000e+00 : f32
    %141 = vector.broadcast %cst_54 : f32 to vector<8x32xf32>
    %142 = arith.addf %125, %141 : vector<8x32xf32>
    %143 = math.exp %125 : vector<8x32xf32>
    %144 = arith.select %140, %142, %143 : vector<8x32xi1>, vector<8x32xf32>
    %145 = vector.shape_cast %144 : vector<8x32xf32> to vector<1x8x32xf32>
    %cst_55 = arith.constant 0.000000e+00 : f32
    %146 = vector.broadcast %cst_55 : f32 to vector<1x64x32xf32>
    %147 = arith.cmpf ogt, %136, %146 : vector<1x64x32xf32>
    %cst_56 = arith.constant 1.000000e+00 : f32
    %148 = vector.broadcast %cst_56 : f32 to vector<1x64x32xf32>
    %149 = arith.addf %136, %148 : vector<1x64x32xf32>
    %150 = math.exp %136 : vector<1x64x32xf32>
    %151 = arith.select %147, %149, %150 : vector<1x64x32xi1>, vector<1x64x32xf32>
    %152 = arith.truncf %151 : vector<1x64x32xf32> to vector<1x64x32xbf16>
    %cst_57 = arith.constant 1.562500e-02 : f32
    %153 = vector.broadcast %cst_57 : f32 to vector<1x64x32xf32>
    %154 = arith.mulf %137, %153 : vector<1x64x32xf32>
    %155 = arith.truncf %154 : vector<1x64x32xf32> to vector<1x64x32xbf16>
    "tpu.trace_start"() <{level = 10 : i32, message = "btc,btv->bcv"}> : () -> ()
    %cst_58 = arith.constant dense<0.000000e+00> : vector<1x32x32xf32>
    %156 = tpu.matmul %152, %155, %cst_58 {dimension_numbers = #tpu.dot_dimension_numbers<[1], [1], [2], [2], [0, 0, 0, 2, 1, 2], [0], [0]>} : vector<1x64x32xbf16>, vector<1x64x32xbf16>, vector<1x32x32xf32> -> vector<1x32x32xf32>
    "tpu.trace_stop"() : () -> ()
    %157 = arith.truncf %156 : vector<1x32x32xf32> to vector<1x32x32xbf16>
    %158 = vector.shape_cast %4 : vector<32x32xbf16> to vector<1x32x32xbf16>
    %159 = arith.mulf %157, %158 : vector<1x32x32xbf16>
    %cst_59 = arith.constant dense<0.000000e+00> : vector<1x32xf32>
    %160 = vector.multi_reduction <add>, %151, %cst_59 [1] : vector<1x64x32xf32> to vector<1x32xf32>
    %161 = vector.shape_cast %160 : vector<1x32xf32> to vector<1x1x32xf32>
    %162 = vector.broadcast %161 : vector<1x1x32xf32> to vector<1x8x32xf32>
    %163 = arith.mulf %145, %162 : vector<1x8x32xf32>
    %164 = vector.shape_cast %163 : vector<1x8x32xf32> to vector<8x32xf32>
    %165 = arith.truncf %164 : vector<8x32xf32> to vector<8x32xbf16>
    %cst_60 = arith.constant dense<0.000000e+00> : vector<8x32xf32>
    %166 = tpu.matmul %165, %4, %cst_60 {dimension_numbers = #tpu.dot_dimension_numbers<[1], [0], [0], [1], [0, 0, 1, 1], [], []>} : vector<8x32xbf16>, vector<32x32xbf16>, vector<8x32xf32> -> vector<8x32xf32>
    %cst_61 = arith.constant 9.99999997E-7 : f32
    %167 = vector.broadcast %cst_61 : f32 to vector<8x32xf32>
    %168 = arith.addf %166, %167 : vector<8x32xf32>
    %169 = tpu.reciprocal %168 {approx = true} : vector<8x32xf32> -> vector<8x32xf32>
    %cst_62 = arith.constant 6.400000e+01 : f32
    %170 = vector.broadcast %cst_62 : f32 to vector<8x32xf32>
    %171 = arith.mulf %169, %170 : vector<8x32xf32>
    %172 = arith.truncf %145 : vector<1x8x32xf32> to vector<1x8x32xbf16>
    "tpu.trace_start"() <{level = 10 : i32, message = "blc,bcv->blv"}> : () -> ()
    %cst_63 = arith.constant dense<0.000000e+00> : vector<1x8x32xf32>
    %173 = tpu.matmul %172, %159, %cst_63 {dimension_numbers = #tpu.dot_dimension_numbers<[2], [1], [1], [2], [0, 0, 0, 1, 1, 2], [0], [0]>} : vector<1x8x32xbf16>, vector<1x32x32xbf16>, vector<1x8x32xf32> -> vector<1x8x32xf32>
    "tpu.trace_stop"() : () -> ()
    %174 = vector.shape_cast %173 : vector<1x8x32xf32> to vector<8x32xf32>
    %175 = arith.mulf %174, %171 : vector<8x32xf32>
    %176 = arith.truncf %175 : vector<8x32xf32> to vector<8x32xbf16>
    %cst_64 = arith.constant dense<0.000000e+00> : vector<8x32xf32>
    %177 = tpu.matmul %176, %138, %cst_64 {dimension_numbers = #tpu.dot_dimension_numbers<[1], [0], [0], [1], [0, 0, 1, 1], [], []>} : vector<8x32xbf16>, vector<32x32xbf16>, vector<8x32xf32> -> vector<8x32xf32>
    %178 = arith.addf %99, %177 : vector<8x32xf32>
    %cst_65 = arith.constant dense<0.000000e+00> : vector<8xf32>
    %179 = vector.multi_reduction <add>, %178, %cst_65 [1] : vector<8x32xf32> to vector<8xf32>
    %180 = vector.shape_cast %179 : vector<8xf32> to vector<8x1xf32>
    %cst_66 = arith.constant 3.200000e+01 : f32
    %181 = vector.broadcast %cst_66 : f32 to vector<8x1xf32>
    %182 = arith.divf %180, %181 : vector<8x1xf32>
    %183 = vector.broadcast %182 : vector<8x1xf32> to vector<8x32xf32>
    %184 = arith.subf %178, %183 : vector<8x32xf32>
    %185 = arith.mulf %184, %184 : vector<8x32xf32>
    %cst_67 = arith.constant dense<0.000000e+00> : vector<8xf32>
    %186 = vector.multi_reduction <add>, %185, %cst_67 [1] : vector<8x32xf32> to vector<8xf32>
    %187 = vector.shape_cast %186 : vector<8xf32> to vector<8x1xf32>
    %cst_68 = arith.constant 3.200000e+01 : f32
    %188 = vector.broadcast %cst_68 : f32 to vector<8x1xf32>
    %189 = arith.divf %187, %188 : vector<8x1xf32>
    %cst_69 = arith.constant 9.99999974E-6 : f32
    %190 = vector.broadcast %cst_69 : f32 to vector<8x1xf32>
    %191 = arith.addf %189, %190 : vector<8x1xf32>
    %192 = math.rsqrt %191 : vector<8x1xf32>
    %193 = vector.broadcast %192 : vector<8x1xf32> to vector<8x32xf32>
    %194 = arith.mulf %184, %193 : vector<8x32xf32>
    %195 = vector.broadcast %10 : vector<1x32xf32> to vector<8x32xf32>
    %196 = arith.mulf %194, %195 : vector<8x32xf32>
    %197 = vector.broadcast %11 : vector<1x32xf32> to vector<8x32xf32>
    %198 = arith.addf %196, %197 : vector<8x32xf32>
    %199 = arith.truncf %198 : vector<8x32xf32> to vector<8x32xbf16>
    %c0_70 = arith.constant 0 : index
    %c0_71 = arith.constant 0 : index
    %200 = vector.load %arg14[%c0_70, %c0_71] : memref<32x64xbf16, #tpu.memory_space<vmem>>, vector<32x64xbf16>
    %cst_72 = arith.constant dense<0.000000e+00> : vector<8x64xf32>
    %201 = tpu.matmul %199, %200, %cst_72 {dimension_numbers = #tpu.dot_dimension_numbers<[1], [0], [0], [1], [0, 0, 1, 1], [], []>} : vector<8x32xbf16>, vector<32x64xbf16>, vector<8x64xf32> -> vector<8x64xf32>
    %cst_73 = arith.constant 0.000000e+00 : f32
    %202 = vector.broadcast %cst_73 : f32 to vector<8x64xf32>
    %203 = arith.maximumf %201, %202 : vector<8x64xf32>
    %204 = arith.truncf %203 : vector<8x64xf32> to vector<8x64xbf16>
    %c0_74 = arith.constant 0 : index
    %c0_75 = arith.constant 0 : index
    %205 = vector.load %arg15[%c0_74, %c0_75] : memref<64x32xbf16, #tpu.memory_space<vmem>>, vector<64x32xbf16>
    %cst_76 = arith.constant dense<0.000000e+00> : vector<8x32xf32>
    %206 = tpu.matmul %204, %205, %cst_76 {dimension_numbers = #tpu.dot_dimension_numbers<[1], [0], [0], [1], [0, 0, 1, 1], [], []>} : vector<8x64xbf16>, vector<64x32xbf16>, vector<8x32xf32> -> vector<8x32xf32>
    %207 = arith.addf %178, %206 : vector<8x32xf32>
    %208 = vector.shape_cast %207 : vector<8x32xf32> to vector<1x8x32xf32>
    %c0_77 = arith.constant 0 : index
    %c0_78 = arith.constant 0 : index
    %c0_79 = arith.constant 0 : index
    %209 = vector.load %arg16[%c0_77, %c0_78, %c0_79] : memref<1x8x32xf32, #tpu.memory_space<vmem>>, vector<1x8x32xf32>
    tpu.vector_store %arg16[%c0_77, %c0_78, %c0_79], %208 {strides = array<i32>} : memref<1x8x32xf32, #tpu.memory_space<vmem>>, vector<1x8x32xf32>,
    return
  }
  func.func @transform_0(%arg0: i32) -> (i32, i32, i32) {
    %c0_i32 = arith.constant 0 : i32
    %c0_i32_0 = arith.constant 0 : i32
    %c0_i32_1 = arith.constant 0 : i32
    return %arg0, %c0_i32, %c0_i32_0 : i32, i32, i32
  }
  func.func @transform_1(%arg0: i32) -> (i32, i32, i32) {
    %c0_i32 = arith.constant 0 : i32
    %c0_i32_0 = arith.constant 0 : i32
    %c0_i32_1 = arith.constant 0 : i32
    return %arg0, %c0_i32, %c0_i32_0 : i32, i32, i32
  }
  func.func @transform_2(%arg0: i32) -> (i32, i32) {
    %c0_i32 = arith.constant 0 : i32
    %c0_i32_0 = arith.constant 0 : i32
    %c0_i32_1 = arith.constant 0 : i32
    return %c0_i32, %c0_i32_0 : i32, i32
  }
  func.func @transform_3(%arg0: i32) -> (i32, i32) {
    %c0_i32 = arith.constant 0 : i32
    %c0_i32_0 = arith.constant 0 : i32
    %c0_i32_1 = arith.constant 0 : i32
    return %c0_i32, %c0_i32_0 : i32, i32
  }
  func.func @transform_4(%arg0: i32) -> (i32, i32) {
    %c0_i32 = arith.constant 0 : i32
    %c0_i32_0 = arith.constant 0 : i32
    %c0_i32_1 = arith.constant 0 : i32
    return %c0_i32, %c0_i32_0 : i32, i32
  }
  func.func @transform_5(%arg0: i32) -> (i32, i32) {
    %c0_i32 = arith.constant 0 : i32
    %c0_i32_0 = arith.constant 0 : i32
    %c0_i32_1 = arith.constant 0 : i32
    return %c0_i32, %c0_i32_0 : i32, i32
  }
  func.func @transform_6(%arg0: i32) -> (i32, i32) {
    %c0_i32 = arith.constant 0 : i32
    %c0_i32_0 = arith.constant 0 : i32
    %c0_i32_1 = arith.constant 0 : i32
    return %c0_i32, %c0_i32_0 : i32, i32
  }
  func.func @transform_7(%arg0: i32) -> (i32, i32) {
    %c0_i32 = arith.constant 0 : i32
    %c0_i32_0 = arith.constant 0 : i32
    %c0_i32_1 = arith.constant 0 : i32
    return %c0_i32, %c0_i32_0 : i32, i32
  }
  func.func @transform_8(%arg0: i32) -> (i32, i32) {
    %c0_i32 = arith.constant 0 : i32
    %c0_i32_0 = arith.constant 0 : i32
    %c0_i32_1 = arith.constant 0 : i32
    return %c0_i32, %c0_i32_0 : i32, i32
  }
  func.func @transform_9(%arg0: i32) -> (i32, i32) {
    %c0_i32 = arith.constant 0 : i32
    %c0_i32_0 = arith.constant 0 : i32
    %c0_i32_1 = arith.constant 0 : i32
    return %c0_i32, %c0_i32_0 : i32, i32
  }
  func.func @transform_10(%arg0: i32) -> (i32, i32) {
    %c0_i32 = arith.constant 0 : i32
    %c0_i32_0 = arith.constant 0 : i32
    %c0_i32_1 = arith.constant 0 : i32
    return %c0_i32, %c0_i32_0 : i32, i32
  }
  func.func @transform_11(%arg0: i32) -> (i32, i32) {
    %c0_i32 = arith.constant 0 : i32
    %c0_i32_0 = arith.constant 0 : i32
    %c0_i32_1 = arith.constant 0 : i32
    return %c0_i32, %c0_i32_0 : i32, i32
  }
  func.func @transform_12(%arg0: i32) -> (i32, i32) {
    %c0_i32 = arith.constant 0 : i32
    %c0_i32_0 = arith.constant 0 : i32
    %c0_i32_1 = arith.constant 0 : i32
    return %c0_i32, %c0_i32_0 : i32, i32
  }
  func.func @transform_13(%arg0: i32) -> (i32, i32) {
    %c0_i32 = arith.constant 0 : i32
    %c0_i32_0 = arith.constant 0 : i32
    %c0_i32_1 = arith.constant 0 : i32
    return %c0_i32, %c0_i32_0 : i32, i32
  }
  func.func @transform_14(%arg0: i32) -> (i32, i32) {
    %c0_i32 = arith.constant 0 : i32
    %c0_i32_0 = arith.constant 0 : i32
    %c0_i32_1 = arith.constant 0 : i32
    return %c0_i32, %c0_i32_0 : i32, i32
  }
  func.func @transform_15(%arg0: i32) -> (i32, i32, i32) {
    %c0_i32 = arith.constant 0 : i32
    %c0_i32_0 = arith.constant 0 : i32
    %c0_i32_1 = arith.constant 0 : i32
    return %arg0, %c0_i32, %c0_i32_0 : i32, i32, i32
  }
}

</mosaic_0001>

<llo_original>
// kernel: decoder_layer_forward.1
$region0: #{decoder_layer_forward.1}
  #allocation0 [shape = 'u32[]', space=smem, size = 0x4, offset = 0x4, fixed_abs, tag = 'smem constant byte address 0x4 - core index']
  #allocation1 [shape = 'u32[144,128]{1,0:T(1,128)}', space=vmem, size = 0x12000, scoped, tag = 'internal scratch']
  %s0 = inlined_call_operand.vmem [shape: f32[2,8,32], index: 0, kind: input, shape index: {}]
  %s1 = inlined_call_operand.vmem [shape: f32[2,64,32], index: 1, kind: input, shape index: {}]
  %s2 = inlined_call_operand.vmem [shape: f32[8,32], index: 2, kind: input, shape index: {}]
  %s3 = inlined_call_operand.vmem [shape: bf16[32,32], index: 3, kind: input, shape index: {}]
  %s4 = inlined_call_operand.vmem [shape: f32[6,32], index: 4, kind: input, shape index: {}]
  %s5 = inlined_call_operand.vmem [shape: f32[6,32], index: 5, kind: input, shape index: {}]
  %s6 = inlined_call_operand.vmem [shape: bf16[32,64], index: 6, kind: input, shape index: {}]
  %s7 = inlined_call_operand.vmem [shape: bf16[32,32], index: 7, kind: input, shape index: {}]
  %s8 = inlined_call_operand.vmem [shape: bf16[32,32], index: 8, kind: input, shape index: {}]
  %s9 = inlined_call_operand.vmem [shape: bf16[32,32], index: 9, kind: input, shape index: {}]
  %s10 = inlined_call_operand.vmem [shape: bf16[32,32], index: 10, kind: input, shape index: {}]
  %s11 = inlined_call_operand.vmem [shape: bf16[32,32], index: 11, kind: input, shape index: {}]
  %s12 = inlined_call_operand.vmem [shape: bf16[32,32], index: 12, kind: input, shape index: {}]
  %s13 = inlined_call_operand.vmem [shape: bf16[32,64], index: 13, kind: input, shape index: {}]
  %s14 = inlined_call_operand.vmem [shape: bf16[64,32], index: 14, kind: input, shape index: {}]
  %s15 = inlined_call_operand.hbm [shape: f32[2,8,32], index: 15, kind: output, shape index: {}]
  %s16 = sld [smem:[#allocation0]]
  $region93: #{decoder_layer_forward.1} parent=0
    _
  %s18 = ssub.s32 1, %s16
  %s19 = scalar_select 0, %s18, %s16
  $region1: #{decoder_layer_forward.1} parent=0
    #allocation2 [shape = 'u8[8192]{0}', space=vmem, size = 0x2000, scoped, tag = 'output window, operand 0']
    #allocation3 [shape = 's32[2]{0}', space=sflag, size = 0x8, scoped, tag = 'scoped memory for decoder_layer_forward.1']
    %20 = vsyncpa [#allocation3], 0
    %s21 = scalar_lea.sflag [#allocation3], 1
    %22 = vsyncpa %s21, 0
    loop: start=0, step=1, limit=4
    $region2: #{decoder_layer_forward.1} parent=1 // loop_pre_header
      _
    $region3: #{decoder_layer_forward.1} parent=1 // loop_header
      %s24 = sphi 0, %s28
      %p25 = scmp.ge.s32.totalorder %s24, 4
      %s34 = sphi 0, %s36
      %s37 = sphi 0, %s34
      %s38 = sphi 0, %s37
      %s54 = sphi 0, %s38
      %s60 = sphi 0, %s62
      %s63 = sphi 0, %s60
      %s64 = sphi 0, %s63
      %s80 = sphi 0, %s64
      %s84 = sphi 0, %s84
      %s86 = sphi 0, %s84
      %s87 = sphi 0, %s86
      %s101 = sphi 0, %s87
      %s105 = sphi 0, %s105
      %s107 = sphi 0, %s105
      %s108 = sphi 0, %s107
      %s122 = sphi 0, %s108
      %s126 = sphi 0, %s126
      %s128 = sphi 0, %s126
      %s129 = sphi 0, %s128
      %s143 = sphi 0, %s129
      %s147 = sphi 0, %s147
      %s149 = sphi 0, %s147
      %s150 = sphi 0, %s149
      %s164 = sphi 0, %s150
      %s168 = sphi 0, %s168
      %s170 = sphi 0, %s168
      %s171 = sphi 0, %s170
      %s185 = sphi 0, %s171
      %s189 = sphi 0, %s189
      %s191 = sphi 0, %s189
      %s192 = sphi 0, %s191
      %s206 = sphi 0, %s192
      %s210 = sphi 0, %s210
      %s212 = sphi 0, %s210
      %s213 = sphi 0, %s212
      %s227 = sphi 0, %s213
      %s231 = sphi 0, %s231
      %s233 = sphi 0, %s231
      %s234 = sphi 0, %s233
      %s248 = sphi 0, %s234
      %s252 = sphi 0, %s252
      %s254 = sphi 0, %s252
      %s255 = sphi 0, %s254
      %s269 = sphi 0, %s255
      %s273 = sphi 0, %s273
      %s275 = sphi 0, %s273
      %s276 = sphi 0, %s275
      %s290 = sphi 0, %s276
      %s294 = sphi 0, %s294
      %s296 = sphi 0, %s294
      %s297 = sphi 0, %s296
      %s311 = sphi 0, %s297
      %s315 = sphi 0, %s315
      %s317 = sphi 0, %s315
      %s318 = sphi 0, %s317
      %s332 = sphi 0, %s318
      %s336 = sphi 0, %s336
      %s338 = sphi 0, %s336
      %s339 = sphi 0, %s338
      %s353 = sphi 0, %s339
      %s359 = sphi 0, %s361
      %s362 = sphi 0, %s359
      %s363 = sphi 0, %s362
      %s379 = sphi 0, %s363
    $region4: #{decoder_layer_forward.1} parent=1 // loop_header_branch
      %27 = sbr.rel (%p25) target = $region8
    $region5: #{decoder_layer_forward.1} parent=1 // loop_body
      %s29 = ssub.s32 %s24, 1
      %s30 = ssub.s32 %s24, 2
      %s31 = sadd.s32 %s24, 1
      %s32 = ssub.s32 %s24, %s31
      %p33 = scmp.eq.s32.totalorder %s32, 0
      %s35 = sadd.s32 %s34, 1
      %s36 = scalar_select %p33, %s34, %s35
      %p39 = pneg %p33
      %p40 = scmp.eq.s32.totalorder %s24, 1
      %p41 = por %p39, %p40
      %p42 = scmp.ne.s32.totalorder %s34, %s37
      %p43 = scmp.eq.s32.totalorder %s24, 0
      %p44 = por %p42, %p43
      %p45 = scmp.ne.s32.totalorder %s34, %s37
      %p46 = scmp.eq.s32.totalorder %s29, 1
      %p47 = por %p45, %p46
      %p48 = scmp.ne.s32.totalorder %s37, %s38
      %p49 = scmp.eq.s32.totalorder %s29, 0
      %p50 = por %p48, %p49
      %p51 = scmp.ne.s32.totalorder %s37, %s38
      %p52 = scmp.eq.s32.totalorder %s30, 1
      %p53 = por %p51, %p52
      %p55 = scmp.ne.s32.totalorder %s38, %s54
      %p56 = scmp.eq.s32.totalorder %s30, 0
      %p57 = por %p55, %p56
      %s58 = ssub.s32 %s24, %s31
      %p59 = scmp.eq.s32.totalorder %s58, 0
      %s61 = sadd.s32 %s60, 1
      %s62 = scalar_select %p59, %s60, %s61
      %p65 = pneg %p59
      %p66 = scmp.eq.s32.totalorder %s24, 1
      %p67 = por %p65, %p66
      %p68 = scmp.ne.s32.totalorder %s60, %s63
      %p69 = scmp.eq.s32.totalorder %s24, 0
      %p70 = por %p68, %p69
      %p71 = scmp.ne.s32.totalorder %s60, %s63
      %p72 = scmp.eq.s32.totalorder %s29, 1
      %p73 = por %p71, %p72
      %p74 = scmp.ne.s32.totalorder %s63, %s64
      %p75 = scmp.eq.s32.totalorder %s29, 0
      %p76 = por %p74, %p75
      %p77 = scmp.ne.s32.totalorder %s63, %s64
      %p78 = scmp.eq.s32.totalorder %s30, 1
      %p79 = por %p77, %p78
      %p81 = scmp.ne.s32.totalorder %s64, %s80
      %p82 = scmp.eq.s32.totalorder %s30, 0
      %p83 = por %p81, %p82
      %s85 = sadd.s32 %s84, 1
      %p88 = scmp.eq.s32.totalorder %s24, 1
      %p89 = scmp.ne.s32.totalorder %s84, %s86
      %p90 = scmp.eq.s32.totalorder %s24, 0
      %p91 = por %p89, %p90
      %p92 = scmp.ne.s32.totalorder %s84, %s86
      %p93 = scmp.eq.s32.totalorder %s29, 1
      %p94 = por %p92, %p93
      %p95 = scmp.ne.s32.totalorder %s86, %s87
      %p96 = scmp.eq.s32.totalorder %s29, 0
      %p97 = por %p95, %p96
      %p98 = scmp.ne.s32.totalorder %s86, %s87
      %p99 = scmp.eq.s32.totalorder %s30, 1
      %p100 = por %p98, %p99
      %p102 = scmp.ne.s32.totalorder %s87, %s101
      %p103 = scmp.eq.s32.totalorder %s30, 0
      %p104 = por %p102, %p103
      %s106 = sadd.s32 %s105, 1
      %p109 = scmp.eq.s32.totalorder %s24, 1
      %p110 = scmp.ne.s32.totalorder %s105, %s107
      %p111 = scmp.eq.s32.totalorder %s24, 0
      %p112 = por %p110, %p111
      %p113 = scmp.ne.s32.totalorder %s105, %s107
      %p114 = scmp.eq.s32.totalorder %s29, 1
      %p115 = por %p113, %p114
      %p116 = scmp.ne.s32.totalorder %s107, %s108
      %p117 = scmp.eq.s32.totalorder %s29, 0
      %p118 = por %p116, %p117
      %p119 = scmp.ne.s32.totalorder %s107, %s108
      %p120 = scmp.eq.s32.totalorder %s30, 1
      %p121 = por %p119, %p120
      %p123 = scmp.ne.s32.totalorder %s108, %s122
      %p124 = scmp.eq.s32.totalorder %s30, 0
      %p125 = por %p123, %p124
      %s127 = sadd.s32 %s126, 1
      %p130 = scmp.eq.s32.totalorder %s24, 1
      %p131 = scmp.ne.s32.totalorder %s126, %s128
      %p132 = scmp.eq.s32.totalorder %s24, 0
      %p133 = por %p131, %p132
      %p134 = scmp.ne.s32.totalorder %s126, %s128
      %p135 = scmp.eq.s32.totalorder %s29, 1
      %p136 = por %p134, %p135
      %p137 = scmp.ne.s32.totalorder %s128, %s129
      %p138 = scmp.eq.s32.totalorder %s29, 0
      %p139 = por %p137, %p138
      %p140 = scmp.ne.s32.totalorder %s128, %s129
      %p141 = scmp.eq.s32.totalorder %s30, 1
      %p142 = por %p140, %p141
      %p144 = scmp.ne.s32.totalorder %s129, %s143
      %p145 = scmp.eq.s32.totalorder %s30, 0
      %p146 = por %p144, %p145
      %s148 = sadd.s32 %s147, 1
      %p151 = scmp.eq.s32.totalorder %s24, 1
      %p152 = scmp.ne.s32.totalorder %s147, %s149
      %p153 = scmp.eq.s32.totalorder %s24, 0
      %p154 = por %p152, %p153
      %p155 = scmp.ne.s32.totalorder %s147, %s149
      %p156 = scmp.eq.s32.totalorder %s29, 1
      %p157 = por %p155, %p156
      %p158 = scmp.ne.s32.totalorder %s149, %s150
      %p159 = scmp.eq.s32.totalorder %s29, 0
      %p160 = por %p158, %p159
      %p161 = scmp.ne.s32.totalorder %s149, %s150
      %p162 = scmp.eq.s32.totalorder %s30, 1
      %p163 = por %p161, %p162
      %p165 = scmp.ne.s32.totalorder %s150, %s164
      %p166 = scmp.eq.s32.totalorder %s30, 0
      %p167 = por %p165, %p166
      %s169 = sadd.s32 %s168, 1
      %p172 = scmp.eq.s32.totalorder %s24, 1
      %p173 = scmp.ne.s32.totalorder %s168, %s170
      %p174 = scmp.eq.s32.totalorder %s24, 0
      %p175 = por %p173, %p174
      %p176 = scmp.ne.s32.totalorder %s168, %s170
      %p177 = scmp.eq.s32.totalorder %s29, 1
      %p178 = por %p176, %p177
      %p179 = scmp.ne.s32.totalorder %s170, %s171
      %p180 = scmp.eq.s32.totalorder %s29, 0
      %p181 = por %p179, %p180
      %p182 = scmp.ne.s32.totalorder %s170, %s171
      %p183 = scmp.eq.s32.totalorder %s30, 1
      %p184 = por %p182, %p183
      %p186 = scmp.ne.s32.totalorder %s171, %s185
      %p187 = scmp.eq.s32.totalorder %s30, 0
      %p188 = por %p186, %p187
      %s190 = sadd.s32 %s189, 1
      %p193 = scmp.eq.s32.totalorder %s24, 1
      %p194 = scmp.ne.s32.totalorder %s189, %s191
      %p195 = scmp.eq.s32.totalorder %s24, 0
      %p196 = por %p194, %p195
      %p197 = scmp.ne.s32.totalorder %s189, %s191
      %p198 = scmp.eq.s32.totalorder %s29, 1
      %p199 = por %p197, %p198
      %p200 = scmp.ne.s32.totalorder %s191, %s192
      %p201 = scmp.eq.s32.totalorder %s29, 0
      %p202 = por %p200, %p201
      %p203 = scmp.ne.s32.totalorder %s191, %s192
      %p204 = scmp.eq.s32.totalorder %s30, 1
      %p205 = por %p203, %p204
      %p207 = scmp.ne.s32.totalorder %s192, %s206
      %p208 = scmp.eq.s32.totalorder %s30, 0
      %p209 = por %p207, %p208
      %s211 = sadd.s32 %s210, 1
      %p214 = scmp.eq.s32.totalorder %s24, 1
      %p215 = scmp.ne.s32.totalorder %s210, %s212
      %p216 = scmp.eq.s32.totalorder %s24, 0
      %p217 = por %p215, %p216
      %p218 = scmp.ne.s32.totalorder %s210, %s212
      %p219 = scmp.eq.s32.totalorder %s29, 1
      %p220 = por %p218, %p219
      %p221 = scmp.ne.s32.totalorder %s212, %s213
      %p222 = scmp.eq.s32.totalorder %s29, 0
      %p223 = por %p221, %p222
      %p224 = scmp.ne.s32.totalorder %s212, %s213
      %p225 = scmp.eq.s32.totalorder %s30, 1
      %p226 = por %p224, %p225
      %p228 = scmp.ne.s32.totalorder %s213, %s227
      %p229 = scmp.eq.s32.totalorder %s30, 0
      %p230 = por %p228, %p229
      %s232 = sadd.s32 %s231, 1
      %p235 = scmp.eq.s32.totalorder %s24, 1
      %p236 = scmp.ne.s32.totalorder %s231, %s233
      %p237 = scmp.eq.s32.totalorder %s24, 0
      %p238 = por %p236, %p237
      %p239 = scmp.ne.s32.totalorder %s231, %s233
      %p240 = scmp.eq.s32.totalorder %s29, 1
      %p241 = por %p239, %p240
      %p242 = scmp.ne.s32.totalorder %s233, %s234
      %p243 = scmp.eq.s32.totalorder %s29, 0
      %p244 = por %p242, %p243
      %p245 = scmp.ne.s32.totalorder %s233, %s234
      %p246 = scmp.eq.s32.totalorder %s30, 1
      %p247 = por %p245, %p246
      %p249 = scmp.ne.s32.totalorder %s234, %s248
      %p250 = scmp.eq.s32.totalorder %s30, 0
      %p251 = por %p249, %p250
      %s253 = sadd.s32 %s252, 1
      %p256 = scmp.eq.s32.totalorder %s24, 1
      %p257 = scmp.ne.s32.totalorder %s252, %s254
      %p258 = scmp.eq.s32.totalorder %s24, 0
      %p259 = por %p257, %p258
      %p260 = scmp.ne.s32.totalorder %s252, %s254
      %p261 = scmp.eq.s32.totalorder %s29, 1
      %p262 = por %p260, %p261
      %p263 = scmp.ne.s32.totalorder %s254, %s255
      %p264 = scmp.eq.s32.totalorder %s29, 0
      %p265 = por %p263, %p264
      %p266 = scmp.ne.s32.totalorder %s254, %s255
      %p267 = scmp.eq.s32.totalorder %s30, 1
      %p268 = por %p266, %p267
      %p270 = scmp.ne.s32.totalorder %s255, %s269
      %p271 = scmp.eq.s32.totalorder %s30, 0
      %p272 = por %p270, %p271
      %s274 = sadd.s32 %s273, 1
      %p277 = scmp.eq.s32.totalorder %s24, 1
      %p278 = scmp.ne.s32.totalorder %s273, %s275
      %p279 = scmp.eq.s32.totalorder %s24, 0
      %p280 = por %p278, %p279
      %p281 = scmp.ne.s32.totalorder %s273, %s275
      %p282 = scmp.eq.s32.totalorder %s29, 1
      %p283 = por %p281, %p282
      %p284 = scmp.ne.s32.totalorder %s275, %s276
      %p285 = scmp.eq.s32.totalorder %s29, 0
      %p286 = por %p284, %p285
      %p287 = scmp.ne.s32.totalorder %s275, %s276
      %p288 = scmp.eq.s32.totalorder %s30, 1
      %p289 = por %p287, %p288
      %p291 = scmp.ne.s32.totalorder %s276, %s290
      %p292 = scmp.eq.s32.totalorder %s30, 0
      %p293 = por %p291, %p292
      %s295 = sadd.s32 %s294, 1
      %p298 = scmp.eq.s32.totalorder %s24, 1
      %p299 = scmp.ne.s32.totalorder %s294, %s296
      %p300 = scmp.eq.s32.totalorder %s24, 0
      %p301 = por %p299, %p300
      %p302 = scmp.ne.s32.totalorder %s294, %s296
      %p303 = scmp.eq.s32.totalorder %s29, 1
      %p304 = por %p302, %p303
      %p305 = scmp.ne.s32.totalorder %s296, %s297
      %p306 = scmp.eq.s32.totalorder %s29, 0
      %p307 = por %p305, %p306
      %p308 = scmp.ne.s32.totalorder %s296, %s297
      %p309 = scmp.eq.s32.totalorder %s30, 1
      %p310 = por %p308, %p309
      %p312 = scmp.ne.s32.totalorder %s297, %s311
      %p313 = scmp.eq.s32.totalorder %s30, 0
      %p314 = por %p312, %p313
      %s316 = sadd.s32 %s315, 1
      %p319 = scmp.eq.s32.totalorder %s24, 1
      %p320 = scmp.ne.s32.totalorder %s315, %s317
      %p321 = scmp.eq.s32.totalorder %s24, 0
      %p322 = por %p320, %p321
      %p323 = scmp.ne.s32.totalorder %s315, %s317
      %p324 = scmp.eq.s32.totalorder %s29, 1
      %p325 = por %p323, %p324
      %p326 = scmp.ne.s32.totalorder %s317, %s318
      %p327 = scmp.eq.s32.totalorder %s29, 0
      %p328 = por %p326, %p327
      %p329 = scmp.ne.s32.totalorder %s317, %s318
      %p330 = scmp.eq.s32.totalorder %s30, 1
      %p331 = por %p329, %p330
      %p333 = scmp.ne.s32.totalorder %s318, %s332
      %p334 = scmp.eq.s32.totalorder %s30, 0
      %p335 = por %p333, %p334
      %s337 = sadd.s32 %s336, 1
      %p340 = scmp.eq.s32.totalorder %s24, 1
      %p341 = scmp.ne.s32.totalorder %s336, %s338
      %p342 = scmp.eq.s32.totalorder %s24, 0
      %p343 = por %p341, %p342
      %p344 = scmp.ne.s32.totalorder %s336, %s338
      %p345 = scmp.eq.s32.totalorder %s29, 1
      %p346 = por %p344, %p345
      %p347 = scmp.ne.s32.totalorder %s338, %s339
      %p348 = scmp.eq.s32.totalorder %s29, 0
      %p349 = por %p347, %p348
      %p350 = scmp.ne.s32.totalorder %s338, %s339
      %p351 = scmp.eq.s32.totalorder %s30, 1
      %p352 = por %p350, %p351
      %p354 = scmp.ne.s32.totalorder %s339, %s353
      %p355 = scmp.eq.s32.totalorder %s30, 0
      %p356 = por %p354, %p355
      %s357 = ssub.s32 %s24, %s31
      %p358 = scmp.eq.s32.totalorder %s357, 0
      %s360 = sadd.s32 %s359, 1
      %s361 = scalar_select %p358, %s359, %s360
      %p364 = pneg %p358
      %p365 = scmp.eq.s32.totalorder %s24, 1
      %p366 = por %p364, %p365
      %p367 = scmp.ne.s32.totalorder %s359, %s362
      %p368 = scmp.eq.s32.totalorder %s24, 0
      %p369 = por %p367, %p368
      %p370 = scmp.ne.s32.totalorder %s359, %s362
      %p371 = scmp.eq.s32.totalorder %s29, 1
      %p372 = por %p370, %p371
      %p373 = scmp.ne.s32.totalorder %s362, %s363
      %p374 = scmp.eq.s32.totalorder %s29, 0
      %p375 = por %p373, %p374
      %p376 = scmp.ne.s32.totalorder %s362, %s363
      %p377 = scmp.eq.s32.totalorder %s30, 1
      %p378 = por %p376, %p377
      %p380 = scmp.ne.s32.totalorder %s363, %s379
      %p381 = scmp.eq.s32.totalorder %s30, 0
      %p382 = por %p380, %p381
      %p383 = scmp.le.s32.totalorder 1, %s24
      %p384 = scmp.lt.s32.totalorder %s24, 3
      %p385 = pnand %p383, %p384
      %p386 = pneg %p385
      // Predicated region
      $region9: #{decoder_layer_forward.1} parent=5 // pred_check
        _
      $region10: #{decoder_layer_forward.1} parent=5 // pred_check_branch
        %388 = sbr.rel (%p385) target = $region12
      $region11: #{decoder_layer_forward.1} parent=5 // pred_region
        %s389 = ssub.s32 %s24, 1
        // Predicated region
        $region13: #{decoder_layer_forward.1} parent=11 // pred_check
          %p390 = pneg %p97
        $region14: #{decoder_layer_forward.1} parent=11 // pred_check_branch
          %392 = sbr.rel (%p390) target = $region16
        $region15: #{decoder_layer_forward.1} parent=11 // pred_region
          _
        $region16: #{decoder_layer_forward.1} parent=11 // pred_fallthru
          _
        // Predicated region
        $region17: #{decoder_layer_forward.1} parent=11 // pred_check
          %p393 = pneg %p118
        $region18: #{decoder_layer_forward.1} parent=11 // pred_check_branch
          %395 = sbr.rel (%p393) target = $region20
        $region19: #{decoder_layer_forward.1} parent=11 // pred_region
          _
        $region20: #{decoder_layer_forward.1} parent=11 // pred_fallthru
          _
        // Predicated region
        $region21: #{decoder_layer_forward.1} parent=11 // pred_check
          %p396 = pneg %p139
        $region22: #{decoder_layer_forward.1} parent=11 // pred_check_branch
          %398 = sbr.rel (%p396) target = $region24
        $region23: #{decoder_layer_forward.1} parent=11 // pred_region
          _
        $region24: #{decoder_layer_forward.1} parent=11 // pred_fallthru
          _
        // Predicated region
        $region25: #{decoder_layer_forward.1} parent=11 // pred_check
          %p399 = pneg %p160
        $region26: #{decoder_layer_forward.1} parent=11 // pred_check_branch
          %401 = sbr.rel (%p399) target = $region28
        $region27: #{decoder_layer_forward.1} parent=11 // pred_region
          _
        $region28: #{decoder_layer_forward.1} parent=11 // pred_fallthru
          _
        // Predicated region
        $region29: #{decoder_layer_forward.1} parent=11 // pred_check
          %p402 = pneg %p181
        $region30: #{decoder_layer_forward.1} parent=11 // pred_check_branch
          %404 = sbr.rel (%p402) target = $region32
        $region31: #{decoder_layer_forward.1} parent=11 // pred_region
          _
        $region32: #{decoder_layer_forward.1} parent=11 // pred_fallthru
          _
        // Predicated region
        $region33: #{decoder_layer_forward.1} parent=11 // pred_check
          %p405 = pneg %p202
        $region34: #{decoder_layer_forward.1} parent=11 // pred_check_branch
          %407 = sbr.rel (%p405) target = $region36
        $region35: #{decoder_layer_forward.1} parent=11 // pred_region
          _
        $region36: #{decoder_layer_forward.1} parent=11 // pred_fallthru
          _
        // Predicated region
        $region37: #{decoder_layer_forward.1} parent=11 // pred_check
          %p408 = pneg %p223
        $region38: #{decoder_layer_forward.1} parent=11 // pred_check_branch
          %410 = sbr.rel (%p408) target = $region40
        $region39: #{decoder_layer_forward.1} parent=11 // pred_region
          _
        $region40: #{decoder_layer_forward.1} parent=11 // pred_fallthru
          _
        // Predicated region
        $region41: #{decoder_layer_forward.1} parent=11 // pred_check
          %p411 = pneg %p244
        $region42: #{decoder_layer_forward.1} parent=11 // pred_check_branch
          %413 = sbr.rel (%p411) target = $region44
        $region43: #{decoder_layer_forward.1} parent=11 // pred_region
          _
        $region44: #{decoder_layer_forward.1} parent=11 // pred_fallthru
          _
        // Predicated region
        $region45: #{decoder_layer_forward.1} parent=11 // pred_check
          %p414 = pneg %p265
        $region46: #{decoder_layer_forward.1} parent=11 // pred_check_branch
          %416 = sbr.rel (%p414) target = $region48
        $region47: #{decoder_layer_forward.1} parent=11 // pred_region
          _
        $region48: #{decoder_layer_forward.1} parent=11 // pred_fallthru
          _
        // Predicated region
        $region49: #{decoder_layer_forward.1} parent=11 // pred_check
          %p417 = pneg %p286
        $region50: #{decoder_layer_forward.1} parent=11 // pred_check_branch
          %419 = sbr.rel (%p417) target = $region52
        $region51: #{decoder_layer_forward.1} parent=11 // pred_region
          _
        $region52: #{decoder_layer_forward.1} parent=11 // pred_fallthru
          _
        // Predicated region
        $region53: #{decoder_layer_forward.1} parent=11 // pred_check
          %p420 = pneg %p307
        $region54: #{decoder_layer_forward.1} parent=11 // pred_check_branch
          %422 = sbr.rel (%p420) target = $region56
        $region55: #{decoder_layer_forward.1} parent=11 // pred_region
          _
        $region56: #{decoder_layer_forward.1} parent=11 // pred_fallthru
          _
        // Predicated region
        $region57: #{decoder_layer_forward.1} parent=11 // pred_check
          %p423 = pneg %p328
        $region58: #{decoder_layer_forward.1} parent=11 // pred_check_branch
          %425 = sbr.rel (%p423) target = $region60
        $region59: #{decoder_layer_forward.1} parent=11 // pred_region
          _
        $region60: #{decoder_layer_forward.1} parent=11 // pred_fallthru
          _
        // Predicated region
        $region61: #{decoder_layer_forward.1} parent=11 // pred_check
          %p426 = pneg %p349
        $region62: #{decoder_layer_forward.1} parent=11 // pred_check_branch
          %428 = sbr.rel (%p426) target = $region64
        $region63: #{decoder_layer_forward.1} parent=11 // pred_region
          _
        $region64: #{decoder_layer_forward.1} parent=11 // pred_fallthru
          _
      $region12: #{decoder_layer_forward.1} parent=5 // pred_fallthru
        _
      %p429 = scmp.lt.s32.totalorder %s24, 2
      // Predicated region
      $region65: #{decoder_layer_forward.1} parent=5 // pred_check
        %p430 = pneg %p429
      $region66: #{decoder_layer_forward.1} parent=5 // pred_check_branch
        %432 = sbr.rel (%p430) target = $region68
      $region67: #{decoder_layer_forward.1} parent=5 // pred_region
        // Predicated region
        $region69: #{decoder_layer_forward.1} parent=67 // pred_check
          %p433 = pneg %p44
        $region70: #{decoder_layer_forward.1} parent=67 // pred_check_branch
          %435 = sbr.rel (%p433) target = $region72
        $region71: #{decoder_layer_forward.1} parent=67 // pred_region
          %p436 = scmp.lt.s32.totalorder %s24, 1
          %s437 = scalar_select %p436, %s24, 1
          %s438 = smul.addr %s437, 8
          %s439 = scalar_lea.vmem %s0, %s438
        $region72: #{decoder_layer_forward.1} parent=67 // pred_fallthru
          _
        // Predicated region
        $region73: #{decoder_layer_forward.1} parent=67 // pred_check
          %p440 = pneg %p70
        $region74: #{decoder_layer_forward.1} parent=67 // pred_check_branch
          %442 = sbr.rel (%p440) target = $region76
        $region75: #{decoder_layer_forward.1} parent=67 // pred_region
          %p443 = scmp.lt.s32.totalorder %s24, 1
          %s444 = scalar_select %p443, %s24, 1
          %s445 = smul.addr %s444, 8
          %s446 = smul.addr %s445, 8
          %s447 = scalar_lea.vmem %s1, %s446
        $region76: #{decoder_layer_forward.1} parent=67 // pred_fallthru
          _
      $region68: #{decoder_layer_forward.1} parent=5 // pred_fallthru
        _
      %p448 = scmp.le.s32.totalorder 1, %s24
      %p449 = scmp.lt.s32.totalorder %s24, 3
      %p450 = pnand %p448, %p449
      %p451 = pneg %p450
      // Predicated region
      $region77: #{decoder_layer_forward.1} parent=5 // pred_check
        _
      $region78: #{decoder_layer_forward.1} parent=5 // pred_check_branch
        %453 = sbr.rel (%p450) target = $region80
      $region79: #{decoder_layer_forward.1} parent=5 // pred_region
        %s454 = ssub.s32 %s24, 1
        %p455 = scmp.lt.s32.totalorder %s29, 1
        %s456 = scalar_select %p455, %s29, 1
        %s457 = smul.addr %s456, 8
        %s458 = scalar_lea.vmem %s0, %s457
        %p459 = pneg %p50
        %p460 = pneg %p47
        %p461 = scmp.lt.s32.totalorder %s29, 1
        %s462 = scalar_select %p461, %s29, 1
        %s463 = smul.addr %s462, 8
        %s464 = smul.addr %s463, 8
        %s465 = scalar_lea.vmem %s1, %s464
        %p466 = pneg %p76
        %p467 = pneg %p73
        %p468 = pneg %p97
        %p469 = pneg %p94
        %p470 = pneg %p118
        %p471 = pneg %p115
        %p472 = pneg %p139
        %p473 = pneg %p136
        %p474 = pneg %p160
        %p475 = pneg %p157
        %p476 = pneg %p181
        %p477 = pneg %p178
        %p478 = pneg %p202
        %p479 = pneg %p199
        %p480 = pneg %p223
        %p481 = pneg %p220
        %p482 = pneg %p244
        %p483 = pneg %p241
        %p484 = pneg %p265
        %p485 = pneg %p262
        %p486 = pneg %p286
        %p487 = pneg %p283
        %p488 = pneg %p307
        %p489 = pneg %p304
        %p490 = pneg %p328
        %p491 = pneg %p325
        %p492 = pneg %p349
        %p493 = pneg %p346
        %p494 = pneg %p375
        %p495 = pneg %p372
        %s496 = sand.u32 %s362, 1
        %s497 = scalar_lea.sflag [#allocation3], %s496
        %s498 = sand.u32 %s362, 1
        %s499 = smul.addr %s498, 8
        %s500 = scalar_lea.vmem [#allocation2], %s499
        %p501 = scmp.lt.s32.totalorder %s29, 1
        %s502 = scalar_select %p501, %s29, 1
        %s503 = smul.addr %s502, 8
        %s504 = scalar_lea.vmem %s0, %s503
        %p505 = scmp.lt.s32.totalorder %s29, 1
        %s506 = scalar_select %p505, %s29, 1
        %s507 = smul.addr %s506, 8
        %s508 = smul.addr %s507, 8
        %s509 = scalar_lea.vmem %s1, %s508
        %v511 = vld [vmem:[%s504] sm:$0xff]
        %v512 = vld [vmem:[%s509] sm:$0xff]
        %v513 = vld [vmem:[%s509 + $0x8] sm:$0xff]
        %v514 = vld [vmem:[%s509 + $0x10] sm:$0xff]
        %v515 = vld [vmem:[%s509 + $0x18] sm:$0xff]
        %v516 = vld [vmem:[%s509 + $0x20] sm:$0xff]
        %v517 = vld [vmem:[%s509 + $0x28] sm:$0xff]
        %v518 = vld [vmem:[%s509 + $0x30] sm:$0xff]
        %v519 = vld [vmem:[%s509 + $0x38] sm:$0xff]
        %v520 = vld [vmem:[%s3] sm:$0xf]
        %v521 = vld [vmem:[%s3 + $0x4] sm:$0xf]
        %v522 = vld [vmem:[%s3 + $0x8] sm:$0xf]
        %v523 = vld [vmem:[%s3 + $0xc] sm:$0xf]
        %v524 = vld [vmem:[%s4] sm:$0x3f]
        %v525 = vld [vmem:[%s5] sm:$0x3f]
        %v526 = vld [vmem:[%s2] sm:$0xff]
        %vm527 = vcmask 261120
        %v528 = vsel %vm527, %v511, 0.0
        %529 = vadd.xlane.f32.xlu0 %v528
        %v530 = vpop.xlane.xlu0 %529
        %v531 = vrcp.pop 32.0
        %v532 = vmul.f32 %v530, %v531
        %v533 = vsub.f32 %v511, %v532
        %v534 = vmul.f32 %v533, %v533
        %v535 = vsel %vm527, %v534, 0.0
        %536 = vadd.xlane.f32.xlu0 %v535
        %v537 = vpop.xlane.xlu0 %536
        %v538 = vmul.f32 %v537, %v531
        %v539 = vadd.f32 %v538, 1e-05
        %v540 = vrsqrt.pop %v539
        %v541 = vmul.f32 %v533, %v540
        %v542 = vlaneseq
        %v543 = vshrl.u32 %v542, 7
        %v544 = vsub.s32 0, %v543
        %v545 = vrot.slane %v524, %v544
        %v546 = vmul.f32 %v541, %v545
        %v547 = vlaneseq
        %v548 = vshrl.u32 %v547, 7
        %v549 = vsub.s32 1, %v548
        %v550 = vrot.slane %v524, %v549
        %v551 = vadd.f32 %v546, %v550
        %v552 = vadd.f32 %v551, %v526
        %v553 = vpack.c.bf16 %v552, %v552
        %v554 = vld [vmem:[%s6] sm:$0xf]
        %v555 = vld [vmem:[%s6 + $0x4] sm:$0xf]
        %v556 = vld [vmem:[%s6 + $0x8] sm:$0xf]
        %v557 = vld [vmem:[%s6 + $0xc] sm:$0xf]
        %v562 = vunpack.c.l.b16 %v554
        %v563 = vunpack.c.l.b16 %v555
        %v564 = vunpack.c.l.b16 %v556
        %v565 = vunpack.c.l.b16 %v557
        %v566 = vpack.c.b16 %v563, %v562
        %v567 = vpack.c.b16 %v565, %v564
        %v571 = vsel %vm527, %v553, 0
        %573 = vmatprep.subr.bf16.mxu0 0
        %574 = vmatpush1.bf16.msra.mxu0 0
        %575 = vmatprep.subr.bf16.mxu0 0
        %576 = vmatpush1.bf16.msra.mxu0 0
        %577 = vmatprep.subr.bf16.mxu0 0
        %578 = vmatpush1.bf16.msra.mxu0 0
        %579 = vmatprep.subr.bf16.mxu0 0
        %580 = vmatpush1.bf16.msra.mxu0 0
        %581 = vmatprep.subr.bf16.mxu0 0
        %582 = vmatpush1.bf16.msra.mxu0 0
        %583 = vmatprep.subr.bf16.mxu0 0
        %584 = vmatpush1.bf16.msra.mxu0 0
        %585 = vmatprep.subr.bf16.mxu0 0
        %586 = vmatpush1.bf16.msra.mxu0 %v567
        %587 = vmatprep.subr.bf16.mxu0 0
        %588 = vmatpush1.bf16.msra.mxu0 %v566
        %589 = vmatprep.subr.bf16.mxu0 0
        %590 = vmatpush2.bf16.msra.mxu0 0
        %591 = vmatprep.subr.bf16.mxu0 0
        %592 = vmatpush2.bf16.msra.mxu0 0
        %593 = vmatprep.subr.bf16.mxu0 0
        %594 = vmatpush2.bf16.msra.mxu0 0
        %595 = vmatprep.subr.bf16.mxu0 0
        %596 = vmatpush2.bf16.msra.mxu0 0
        %597 = vmatprep.subr.bf16.mxu0 0
        %598 = vmatpush2.bf16.msra.mxu0 0
        %599 = vmatprep.subr.bf16.mxu0 0
        %600 = vmatpush2.bf16.msra.mxu0 0
        %601 = vmatprep.subr.bf16.mxu0 0
        %602 = vmatpush2.bf16.msra.mxu0 0
        %603 = vmatprep.subr.bf16.mxu0 0
        %604 = vmatpush2.bf16.msra.mxu0 0
        %605 = vmatprep.mubr.bf16.mxu0 0
        %606 = vmatmul.mubr.bf16.gmra.mxu0 %v571
        %v607 = vpop.f32.mrf.mxu0
        %v608 = vadd.f32 0.0, %v607
        %v609 = vpop.f32.mrf.mxu0
        %v610 = vpop.f32.mrf.mxu0
        %v611 = vpop.f32.mrf.mxu0
        %612 = vdwg.mxu0
        %v613 = vlaneseq
        %v614 = vshrl.u32 %v613, 7
        %v615 = vsub.s32 0, %v614
        %v616 = vrot.slane %v525, %v615
        %v617 = vadd.f32 %v608, %v616
        %v618 = vlaneseq
        %v619 = vshrl.u32 %v618, 7
        %v620 = vsub.s32 1, %v619
        %v621 = vrot.slane %v525, %v620
        %623 = vrot.lane.b32.xlu0 %v621, 32
        %v624 = vpop.permute.xlu0 %623
        %v626 = vadd.f32 %v608, %v624
        %v627 = vpack.c.bf16 %v551, %v551
        %v628 = vld [vmem:[%s7] sm:$0xf]
        %v629 = vld [vmem:[%s7 + $0x4] sm:$0xf]
        %v630 = vld [vmem:[%s7 + $0x8] sm:$0xf]
        %v631 = vld [vmem:[%s7 + $0xc] sm:$0xf]
        %v632 = vlaneseq
        %v633 = vshrl.u32 %v632, 7
        %v634 = vsub.s32 2, %v633
        %v635 = vrot.slane %v525, %v634
        %v640 = vunpack.c.l.b16 %v628
        %v641 = vunpack.c.l.b16 %v629
        %v642 = vunpack.c.l.b16 %v630
        %v643 = vunpack.c.l.b16 %v631
        %v644 = vpack.c.b16 %v641, %v640
        %v645 = vpack.c.b16 %v643, %v642
        %v649 = vsel %vm527, %v627, 0
        %651 = vmatprep.subr.bf16.mxu0 0
        %652 = vmatpush1.bf16.msra.mxu0 0
        %653 = vmatprep.subr.bf16.mxu0 0
        %654 = vmatpush1.bf16.msra.mxu0 0
        %655 = vmatprep.subr.bf16.mxu0 0
        %656 = vmatpush1.bf16.msra.mxu0 0
        %657 = vmatprep.subr.bf16.mxu0 0
        %658 = vmatpush1.bf16.msra.mxu0 0
        %659 = vmatprep.subr.bf16.mxu0 0
        %660 = vmatpush1.bf16.msra.mxu0 0
        %661 = vmatprep.subr.bf16.mxu0 0
        %662 = vmatpush1.bf16.msra.mxu0 0
        %663 = vmatprep.subr.bf16.mxu0 0
        %664 = vmatpush1.bf16.msra.mxu0 %v645
        %665 = vmatprep.subr.bf16.mxu0 0
        %666 = vmatpush1.bf16.msra.mxu0 %v644
        %667 = vmatprep.subr.bf16.mxu0 0
        %668 = vmatpush2.bf16.msra.mxu0 0
        %669 = vmatprep.subr.bf16.mxu0 0
        %670 = vmatpush2.bf16.msra.mxu0 0
        %671 = vmatprep.subr.bf16.mxu0 0
        %672 = vmatpush2.bf16.msra.mxu0 0
        %673 = vmatprep.subr.bf16.mxu0 0
        %674 = vmatpush2.bf16.msra.mxu0 0
        %675 = vmatprep.subr.bf16.mxu0 0
        %676 = vmatpush2.bf16.msra.mxu0 0
        %677 = vmatprep.subr.bf16.mxu0 0
        %678 = vmatpush2.bf16.msra.mxu0 0
        %679 = vmatprep.subr.bf16.mxu0 0
        %680 = vmatpush2.bf16.msra.mxu0 0
        %681 = vmatprep.subr.bf16.mxu0 0
        %682 = vmatpush2.bf16.msra.mxu0 0
        %683 = vmatprep.mubr.bf16.mxu0 0
        %684 = vmatmul.mubr.bf16.gmra.mxu0 %v649
        %v685 = vpop.f32.mrf.mxu0
        %v686 = vadd.f32 %v635, %v685
        %v687 = vpop.f32.mrf.mxu0
        %v688 = vpop.f32.mrf.mxu0
        %v689 = vpop.f32.mrf.mxu0
        %690 = vdwg.mxu0
        %v691 = vld [vmem:[%s8] sm:$0xf]
        %v692 = vld [vmem:[%s8 + $0x4] sm:$0xf]
        %v693 = vld [vmem:[%s8 + $0x8] sm:$0xf]
        %v694 = vld [vmem:[%s8 + $0xc] sm:$0xf]
        %vm695 = vcmp.gt.f32.partialorder %v617, 0.0
        %v696 = vadd.f32 %v617, 1.0
        %v697 = vmul.f32 %v617, 1.442695
        %v698 = vpow.pop %v697
        %v699 = vsel %vm695, %v696, %v698
        %vm700 = vcmp.gt.f32.partialorder %v626, 0.0
        %v701 = vadd.f32 %v626, 1.0
        %v702 = vmul.f32 %v626, 1.442695
        %v703 = vpow.pop %v702
        %v704 = vsel %vm700, %v701, %v703
        %v705 = vpack.c.bf16 %v704, %v704
        %v706 = vmul.f32 %v686, 0.125
        %v707 = vpack.c.bf16 %v706, %v706
        %709 = vrot.lane.b32.xlu0 %v705, 96
        %v710 = vpop.permute.xlu0 %709
        %712 = vxpose.xlu0.c.b16.start [1/8] %v710, 128
        %713 = vxpose.xlu0.c.b16.cont [2/8] 0, 128
        %714 = vxpose.xlu0.c.b16.cont [3/8] 0, 128
        %715 = vxpose.xlu0.c.b16.cont [4/8] 0, 128
        %716 = vxpose.xlu0.c.b16.cont [5/8] 0, 128
        %717 = vxpose.xlu0.c.b16.cont [6/8] 0, 128
        %718 = vxpose.xlu0.c.b16.cont [7/8] 0, 128
        %719 = vxpose.xlu0.c.b16.end [8/8] 0, 128
        %v720 = vpop.trf.xlu0
        %v721 = vpop.trf.xlu0
        %v722 = vpop.trf.xlu0
        %v723 = vpop.trf.xlu0
        %v724 = vpop.trf.xlu0
        %v725 = vpop.trf.xlu0
        %v726 = vpop.trf.xlu0
        %v727 = vpop.trf.xlu0
        %vm728 = vcmask 64512
        %v730 = vsel %vm728, %v720, 0
        %v733 = vsel %vm728, %v721, 0
        %vm735 = vcmask 1043456
        %v737 = vsel %vm735, %v707, 0
        %739 = vmatprep.subr.bf16.mxu0 0
        %740 = vmatpush1.bf16.msra.mxu0 0
        %741 = vmatprep.subr.bf16.mxu0 0
        %742 = vmatpush1.bf16.msra.mxu0 0
        %743 = vmatprep.subr.bf16.mxu0 0
        %744 = vmatpush1.bf16.msra.mxu0 0
        %745 = vmatprep.subr.bf16.mxu0 0
        %746 = vmatpush1.bf16.msra.mxu0 0
        %747 = vmatprep.subr.bf16.mxu0 0
        %748 = vmatpush1.bf16.msra.mxu0 0
        %749 = vmatprep.subr.bf16.mxu0 0
        %750 = vmatpush1.bf16.msra.mxu0 0
        %751 = vmatprep.subr.bf16.mxu0 0
        %752 = vmatpush1.bf16.msra.mxu0 0
        %753 = vmatprep.subr.bf16.mxu0 0
        %754 = vmatpush1.bf16.msra.mxu0 %v737
        %755 = vmatprep.subr.bf16.mxu0 0
        %756 = vmatpush2.bf16.msra.mxu0 0
        %757 = vmatprep.subr.bf16.mxu0 0
        %758 = vmatpush2.bf16.msra.mxu0 0
        %759 = vmatprep.subr.bf16.mxu0 0
        %760 = vmatpush2.bf16.msra.mxu0 0
        %761 = vmatprep.subr.bf16.mxu0 0
        %762 = vmatpush2.bf16.msra.mxu0 0
        %763 = vmatprep.subr.bf16.mxu0 0
        %764 = vmatpush2.bf16.msra.mxu0 0
        %765 = vmatprep.subr.bf16.mxu0 0
        %766 = vmatpush2.bf16.msra.mxu0 0
        %767 = vmatprep.subr.bf16.mxu0 0
        %768 = vmatpush2.bf16.msra.mxu0 0
        %769 = vmatprep.subr.bf16.mxu0 0
        %770 = vmatpush2.bf16.msra.mxu0 0
        %771 = vmatprep.mubr.bf16.mxu0 0
        %772 = vmatmul.mubr.bf16.gmra.mxu0 %v730
        %v773 = vpop.f32.mrf.mxu0
        %v774 = vadd.f32 0.0, %v773
        %v775 = vpop.f32.mrf.mxu0
        %v776 = vpop.f32.mrf.mxu0
        %v777 = vadd.f32 0.0, %v776
        %v778 = vpop.f32.mrf.mxu0
        %779 = vmatprep.mubr.bf16.mxu0 0
        %780 = vmatmul.mubr.bf16.gmra.mxu0 %v733
        %v781 = vpop.f32.mrf.mxu0
        %v782 = vadd.f32 0.0, %v781
        %v783 = vpop.f32.mrf.mxu0
        %v784 = vpop.f32.mrf.mxu0
        %v785 = vadd.f32 0.0, %v784
        %v786 = vpop.f32.mrf.mxu0
        %787 = vdwg.mxu0
        %v788 = vpack.c.bf16 %v777, %v774
        %v789 = vpack.c.bf16 %v785, %v782
        %v794 = vunpack.c.l.b16 %v520
        %v795 = vunpack.c.l.b16 %v521
        %v796 = vunpack.c.l.b16 %v522
        %v797 = vunpack.c.l.b16 %v523
        %v798 = vpack.c.b16 %v795, %v794
        %v799 = vpack.c.b16 %v797, %v796
        %v802 = vmul.bf16 %v788, %v798
        %v803 = vmul.bf16 %v789, %v799
        %vm804 = vcmask 523520
        %v805 = vsel %vm804, %v704, 0.0
        %v806 = vrot.slane %v805, 4
        %v807 = vadd.f32 %v805, %v806
        %v808 = vrot.slane %v807, 2
        %v809 = vadd.f32 %v807, %v808
        %v810 = vrot.slane %v809, 1
        %v811 = vadd.f32 %v809, %v810
        %813 = vrot.lane.b32.xlu0 %v811, 96
        %v814 = vpop.permute.xlu0 %813
        %v816 = vmul.f32 %v699, %v814
        %v817 = vpack.c.bf16 %v816, %v816
        %v819 = vsel %vm527, %v817, 0
        %821 = vmatprep.subr.bf16.mxu0 0
        %822 = vmatpush1.bf16.msra.mxu0 0
        %823 = vmatprep.subr.bf16.mxu0 0
        %824 = vmatpush1.bf16.msra.mxu0 0
        %825 = vmatprep.subr.bf16.mxu0 0
        %826 = vmatpush1.bf16.msra.mxu0 0
        %827 = vmatprep.subr.bf16.mxu0 0
        %828 = vmatpush1.bf16.msra.mxu0 0
        %829 = vmatprep.subr.bf16.mxu0 0
        %830 = vmatpush1.bf16.msra.mxu0 0
        %831 = vmatprep.subr.bf16.mxu0 0
        %832 = vmatpush1.bf16.msra.mxu0 0
        %833 = vmatprep.subr.bf16.mxu0 0
        %834 = vmatpush1.bf16.msra.mxu0 %v799
        %835 = vmatprep.subr.bf16.mxu0 0
        %836 = vmatpush1.bf16.msra.mxu0 %v798
        %837 = vmatprep.subr.bf16.mxu0 0
        %838 = vmatpush2.bf16.msra.mxu0 0
        %839 = vmatprep.subr.bf16.mxu0 0
        %840 = vmatpush2.bf16.msra.mxu0 0
        %841 = vmatprep.subr.bf16.mxu0 0
        %842 = vmatpush2.bf16.msra.mxu0 0
        %843 = vmatprep.subr.bf16.mxu0 0
        %844 = vmatpush2.bf16.msra.mxu0 0
        %845 = vmatprep.subr.bf16.mxu0 0
        %846 = vmatpush2.bf16.msra.mxu0 0
        %847 = vmatprep.subr.bf16.mxu0 0
        %848 = vmatpush2.bf16.msra.mxu0 0
        %849 = vmatprep.subr.bf16.mxu0 0
        %850 = vmatpush2.bf16.msra.mxu0 0
        %851 = vmatprep.subr.bf16.mxu0 0
        %852 = vmatpush2.bf16.msra.mxu0 0
        %853 = vmatprep.mubr.bf16.mxu0 0
        %854 = vmatmul.mubr.bf16.gmra.mxu0 %v819
        %v855 = vpop.f32.mrf.mxu0
        %v856 = vadd.f32 1e-06, %v855
        %v857 = vpop.f32.mrf.mxu0
        %v858 = vpop.f32.mrf.mxu0
        %v859 = vpop.f32.mrf.mxu0
        %860 = vdwg.mxu0
        %v861 = vrcp.pop %v856
        %v862 = vmul.f32 %v861, 8.0
        %v863 = vpack.c.bf16 %v699, %v699
        %v865 = vsel %vm527, %v863, 0
        %867 = vmatprep.subr.bf16.mxu0 0
        %868 = vmatpush1.bf16.msra.mxu0 0
        %869 = vmatprep.subr.bf16.mxu0 0
        %870 = vmatpush1.bf16.msra.mxu0 0
        %871 = vmatprep.subr.bf16.mxu0 0
        %872 = vmatpush1.bf16.msra.mxu0 0
        %873 = vmatprep.subr.bf16.mxu0 0
        %874 = vmatpush1.bf16.msra.mxu0 0
        %875 = vmatprep.subr.bf16.mxu0 0
        %876 = vmatpush1.bf16.msra.mxu0 0
        %877 = vmatprep.subr.bf16.mxu0 0
        %878 = vmatpush1.bf16.msra.mxu0 0
        %879 = vmatprep.subr.bf16.mxu0 0
        %880 = vmatpush1.bf16.msra.mxu0 %v803
        %881 = vmatprep.subr.bf16.mxu0 0
        %882 = vmatpush1.bf16.msra.mxu0 %v802
        %883 = vmatprep.subr.bf16.mxu0 0
        %884 = vmatpush2.bf16.msra.mxu0 0
        %885 = vmatprep.subr.bf16.mxu0 0
        %886 = vmatpush2.bf16.msra.mxu0 0
        %887 = vmatprep.subr.bf16.mxu0 0
        %888 = vmatpush2.bf16.msra.mxu0 0
        %889 = vmatprep.subr.bf16.mxu0 0
        %890 = vmatpush2.bf16.msra.mxu0 0
        %891 = vmatprep.subr.bf16.mxu0 0
        %892 = vmatpush2.bf16.msra.mxu0 0
        %893 = vmatprep.subr.bf16.mxu0 0
        %894 = vmatpush2.bf16.msra.mxu0 0
        %895 = vmatprep.subr.bf16.mxu0 0
        %896 = vmatpush2.bf16.msra.mxu0 0
        %897 = vmatprep.subr.bf16.mxu0 0
        %898 = vmatpush2.bf16.msra.mxu0 0
        %899 = vmatprep.mubr.bf16.mxu0 0
        %900 = vmatmul.mubr.bf16.gmra.mxu0 %v865
        %v901 = vpop.f32.mrf.mxu0
        %v902 = vadd.f32 0.0, %v901
        %v903 = vpop.f32.mrf.mxu0
        %v904 = vpop.f32.mrf.mxu0
        %v905 = vpop.f32.mrf.mxu0
        %906 = vdwg.mxu0
        %v907 = vmul.f32 %v902, %v862
        %v908 = vpack.c.bf16 %v907, %v907
        %v913 = vunpack.c.l.b16 %v691
        %v914 = vunpack.c.l.b16 %v692
        %v915 = vunpack.c.l.b16 %v693
        %v916 = vunpack.c.l.b16 %v694
        %v917 = vpack.c.b16 %v914, %v913
        %v918 = vpack.c.b16 %v916, %v915
        %v922 = vsel %vm527, %v908, 0
        %924 = vmatprep.subr.bf16.mxu0 0
        %925 = vmatpush1.bf16.msra.mxu0 0
        %926 = vmatprep.subr.bf16.mxu0 0
        %927 = vmatpush1.bf16.msra.mxu0 0
        %928 = vmatprep.subr.bf16.mxu0 0
        %929 = vmatpush1.bf16.msra.mxu0 0
        %930 = vmatprep.subr.bf16.mxu0 0
        %931 = vmatpush1.bf16.msra.mxu0 0
        %932 = vmatprep.subr.bf16.mxu0 0
        %933 = vmatpush1.bf16.msra.mxu0 0
        %934 = vmatprep.subr.bf16.mxu0 0
        %935 = vmatpush1.bf16.msra.mxu0 0
        %936 = vmatprep.subr.bf16.mxu0 0
        %937 = vmatpush1.bf16.msra.mxu0 %v918
        %938 = vmatprep.subr.bf16.mxu0 0
        %939 = vmatpush1.bf16.msra.mxu0 %v917
        %940 = vmatprep.subr.bf16.mxu0 0
        %941 = vmatpush2.bf16.msra.mxu0 0
        %942 = vmatprep.subr.bf16.mxu0 0
        %943 = vmatpush2.bf16.msra.mxu0 0
        %944 = vmatprep.subr.bf16.mxu0 0
        %945 = vmatpush2.bf16.msra.mxu0 0
        %946 = vmatprep.subr.bf16.mxu0 0
        %947 = vmatpush2.bf16.msra.mxu0 0
        %948 = vmatprep.subr.bf16.mxu0 0
        %949 = vmatpush2.bf16.msra.mxu0 0
        %950 = vmatprep.subr.bf16.mxu0 0
        %951 = vmatpush2.bf16.msra.mxu0 0
        %952 = vmatprep.subr.bf16.mxu0 0
        %953 = vmatpush2.bf16.msra.mxu0 0
        %954 = vmatprep.subr.bf16.mxu0 0
        %955 = vmatpush2.bf16.msra.mxu0 0
        %956 = vmatprep.mubr.bf16.mxu0 0
        %957 = vmatmul.mubr.bf16.gmra.mxu0 %v922
        %v958 = vpop.f32.mrf.mxu0
        %v959 = vadd.f32 0.0, %v958
        %v960 = vpop.f32.mrf.mxu0
        %v961 = vpop.f32.mrf.mxu0
        %v962 = vpop.f32.mrf.mxu0
        %963 = vdwg.mxu0
        %v964 = vadd.f32 %v511, %v959
        %v965 = vsel %vm527, %v964, 0.0
        %966 = vadd.xlane.f32.xlu0 %v965
        %v967 = vpop.xlane.xlu0 %966
        %v968 = vmul.f32 %v967, %v531
        %v969 = vsub.f32 %v964, %v968
        %v970 = vmul.f32 %v969, %v969
        %v971 = vsel %vm527, %v970, 0.0
        %972 = vadd.xlane.f32.xlu0 %v971
        %v973 = vpop.xlane.xlu0 %972
        %v974 = vmul.f32 %v973, %v531
        %v975 = vadd.f32 %v974, 1e-05
        %v976 = vrsqrt.pop %v975
        %v977 = vmul.f32 %v969, %v976
        %v978 = vlaneseq
        %v979 = vshrl.u32 %v978, 7
        %v980 = vsub.s32 2, %v979
        %v981 = vrot.slane %v524, %v980
        %v982 = vmul.f32 %v977, %v981
        %v983 = vlaneseq
        %v984 = vshrl.u32 %v983, 7
        %v985 = vsub.s32 3, %v984
        %v986 = vrot.slane %v524, %v985
        %v987 = vadd.f32 %v982, %v986
        %v988 = vadd.f32 %v987, %v526
        %v989 = vpack.c.bf16 %v988, %v988
        %v990 = vld [vmem:[%s9] sm:$0xf]
        %v991 = vld [vmem:[%s9 + $0x4] sm:$0xf]
        %v992 = vld [vmem:[%s9 + $0x8] sm:$0xf]
        %v993 = vld [vmem:[%s9 + $0xc] sm:$0xf]
        %v994 = vlaneseq
        %v995 = vshrl.u32 %v994, 7
        %v996 = vsub.s32 3, %v995
        %v997 = vrot.slane %v525, %v996
        %v1002 = vunpack.c.l.b16 %v990
        %v1003 = vunpack.c.l.b16 %v991
        %v1004 = vunpack.c.l.b16 %v992
        %v1005 = vunpack.c.l.b16 %v993
        %v1006 = vpack.c.b16 %v1003, %v1002
        %v1007 = vpack.c.b16 %v1005, %v1004
        %v1011 = vsel %vm527, %v989, 0
        %1013 = vmatprep.subr.bf16.mxu0 0
        %1014 = vmatpush1.bf16.msra.mxu0 0
        %1015 = vmatprep.subr.bf16.mxu0 0
        %1016 = vmatpush1.bf16.msra.mxu0 0
        %1017 = vmatprep.subr.bf16.mxu0 0
        %1018 = vmatpush1.bf16.msra.mxu0 0
        %1019 = vmatprep.subr.bf16.mxu0 0
        %1020 = vmatpush1.bf16.msra.mxu0 0
        %1021 = vmatprep.subr.bf16.mxu0 0
        %1022 = vmatpush1.bf16.msra.mxu0 0
        %1023 = vmatprep.subr.bf16.mxu0 0
        %1024 = vmatpush1.bf16.msra.mxu0 0
        %1025 = vmatprep.subr.bf16.mxu0 0
        %1026 = vmatpush1.bf16.msra.mxu0 %v1007
        %1027 = vmatprep.subr.bf16.mxu0 0
        %1028 = vmatpush1.bf16.msra.mxu0 %v1006
        %1029 = vmatprep.subr.bf16.mxu0 0
        %1030 = vmatpush2.bf16.msra.mxu0 0
        %1031 = vmatprep.subr.bf16.mxu0 0
        %1032 = vmatpush2.bf16.msra.mxu0 0
        %1033 = vmatprep.subr.bf16.mxu0 0
        %1034 = vmatpush2.bf16.msra.mxu0 0
        %1035 = vmatprep.subr.bf16.mxu0 0
        %1036 = vmatpush2.bf16.msra.mxu0 0
        %1037 = vmatprep.subr.bf16.mxu0 0
        %1038 = vmatpush2.bf16.msra.mxu0 0
        %1039 = vmatprep.subr.bf16.mxu0 0
        %1040 = vmatpush2.bf16.msra.mxu0 0
        %1041 = vmatprep.subr.bf16.mxu0 0
        %1042 = vmatpush2.bf16.msra.mxu0 0
        %1043 = vmatprep.subr.bf16.mxu0 0
        %1044 = vmatpush2.bf16.msra.mxu0 0
        %1045 = vmatprep.mubr.bf16.mxu0 0
        %1046 = vmatmul.mubr.bf16.gmra.mxu0 %v1011
        %v1047 = vpop.f32.mrf.mxu0
        %v1048 = vadd.f32 %v997, %v1047
        %v1049 = vpop.f32.mrf.mxu0
        %v1050 = vpop.f32.mrf.mxu0
        %v1051 = vpop.f32.mrf.mxu0
        %1052 = vdwg.mxu0
        %v1053 = vpack.c.bf16 %v513, %v512
        %v1054 = vpack.c.bf16 %v515, %v514
        %v1055 = vpack.c.bf16 %v517, %v516
        %v1056 = vpack.c.bf16 %v519, %v518
        %v1057 = vld [vmem:[%s10] sm:$0xf]
        %v1058 = vld [vmem:[%s10 + $0x4] sm:$0xf]
        %v1059 = vld [vmem:[%s10 + $0x8] sm:$0xf]
        %v1060 = vld [vmem:[%s10 + $0xc] sm:$0xf]
        %v1061 = vlaneseq
        %v1062 = vshrl.u32 %v1061, 7
        %v1063 = vsub.s32 4, %v1062
        %v1064 = vrot.slane %v525, %v1063
        %v1069 = vunpack.c.l.b16 %v1057
        %v1070 = vunpack.c.l.b16 %v1058
        %v1071 = vunpack.c.l.b16 %v1059
        %v1072 = vunpack.c.l.b16 %v1060
        %v1073 = vpack.c.b16 %v1070, %v1069
        %v1074 = vpack.c.b16 %v1072, %v1071
        %v1078 = vsel %vm527, %v1053, 0
        %v1081 = vsel %vm527, %v1054, 0
        %v1084 = vsel %vm527, %v1055, 0
        %v1087 = vsel %vm527, %v1056, 0
        %1089 = vmatprep.subr.bf16.mxu0 0
        %1090 = vmatpush1.bf16.msra.mxu0 0
        %1091 = vmatprep.subr.bf16.mxu0 0
        %1092 = vmatpush1.bf16.msra.mxu0 0
        %1093 = vmatprep.subr.bf16.mxu0 0
        %1094 = vmatpush1.bf16.msra.mxu0 0
        %1095 = vmatprep.subr.bf16.mxu0 0
        %1096 = vmatpush1.bf16.msra.mxu0 0
        %1097 = vmatprep.subr.bf16.mxu0 0
        %1098 = vmatpush1.bf16.msra.mxu0 0
        %1099 = vmatprep.subr.bf16.mxu0 0
        %1100 = vmatpush1.bf16.msra.mxu0 0
        %1101 = vmatprep.subr.bf16.mxu0 0
        %1102 = vmatpush1.bf16.msra.mxu0 %v1074
        %1103 = vmatprep.subr.bf16.mxu0 0
        %1104 = vmatpush1.bf16.msra.mxu0 %v1073
        %1105 = vmatprep.subr.bf16.mxu0 0
        %1106 = vmatpush2.bf16.msra.mxu0 0
        %1107 = vmatprep.subr.bf16.mxu0 0
        %1108 = vmatpush2.bf16.msra.mxu0 0
        %1109 = vmatprep.subr.bf16.mxu0 0
        %1110 = vmatpush2.bf16.msra.mxu0 0
        %1111 = vmatprep.subr.bf16.mxu0 0
        %1112 = vmatpush2.bf16.msra.mxu0 0
        %1113 = vmatprep.subr.bf16.mxu0 0
        %1114 = vmatpush2.bf16.msra.mxu0 0
        %1115 = vmatprep.subr.bf16.mxu0 0
        %1116 = vmatpush2.bf16.msra.mxu0 0
        %1117 = vmatprep.subr.bf16.mxu0 0
        %1118 = vmatpush2.bf16.msra.mxu0 0
        %1119 = vmatprep.subr.bf16.mxu0 0
        %1120 = vmatpush2.bf16.msra.mxu0 0
        %1121 = vmatprep.mubr.bf16.mxu0 0
        %1122 = vmatmul.mubr.bf16.gmra.mxu0 %v1078
        %v1123 = vpop.f32.mrf.mxu0
        %v1124 = vadd.f32 %v1064, %v1123
        %v1125 = vpop.f32.mrf.mxu0
        %v1126 = vpop.f32.mrf.mxu0
        %v1127 = vadd.f32 %v1064, %v1126
        %v1128 = vpop.f32.mrf.mxu0
        %1129 = vmatprep.mubr.bf16.mxu0 0
        %1130 = vmatmul.mubr.bf16.gmra.mxu0 %v1081
        %v1131 = vpop.f32.mrf.mxu0
        %v1132 = vadd.f32 %v1064, %v1131
        %v1133 = vpop.f32.mrf.mxu0
        %v1134 = vpop.f32.mrf.mxu0
        %v1135 = vadd.f32 %v1064, %v1134
        %v1136 = vpop.f32.mrf.mxu0
        %1137 = vmatprep.mubr.bf16.mxu0 0
        %1138 = vmatmul.mubr.bf16.gmra.mxu0 %v1084
        %v1139 = vpop.f32.mrf.mxu0
        %v1140 = vadd.f32 %v1064, %v1139
        %v1141 = vpop.f32.mrf.mxu0
        %v1142 = vpop.f32.mrf.mxu0
        %v1143 = vadd.f32 %v1064, %v1142
        %v1144 = vpop.f32.mrf.mxu0
        %1145 = vmatprep.mubr.bf16.mxu0 0
        %1146 = vmatmul.mubr.bf16.gmra.mxu0 %v1087
        %v1147 = vpop.f32.mrf.mxu0
        %v1148 = vadd.f32 %v1064, %v1147
        %v1149 = vpop.f32.mrf.mxu0
        %v1150 = vpop.f32.mrf.mxu0
        %v1151 = vadd.f32 %v1064, %v1150
        %v1152 = vpop.f32.mrf.mxu0
        %1153 = vdwg.mxu0
        %v1154 = vld [vmem:[%s11] sm:$0xf]
        %v1155 = vld [vmem:[%s11 + $0x4] sm:$0xf]
        %v1156 = vld [vmem:[%s11 + $0x8] sm:$0xf]
        %v1157 = vld [vmem:[%s11 + $0xc] sm:$0xf]
        %v1158 = vlaneseq
        %v1159 = vshrl.u32 %v1158, 7
        %v1160 = vsub.s32 5, %v1159
        %v1161 = vrot.slane %v525, %v1160
        %v1166 = vunpack.c.l.b16 %v1154
        %v1167 = vunpack.c.l.b16 %v1155
        %v1168 = vunpack.c.l.b16 %v1156
        %v1169 = vunpack.c.l.b16 %v1157
        %v1170 = vpack.c.b16 %v1167, %v1166
        %v1171 = vpack.c.b16 %v1169, %v1168
        %1174 = vmatprep.subr.bf16.mxu0 0
        %1175 = vmatpush1.bf16.msra.mxu0 0
        %1176 = vmatprep.subr.bf16.mxu0 0
        %1177 = vmatpush1.bf16.msra.mxu0 0
        %1178 = vmatprep.subr.bf16.mxu0 0
        %1179 = vmatpush1.bf16.msra.mxu0 0
        %1180 = vmatprep.subr.bf16.mxu0 0
        %1181 = vmatpush1.bf16.msra.mxu0 0
        %1182 = vmatprep.subr.bf16.mxu0 0
        %1183 = vmatpush1.bf16.msra.mxu0 0
        %1184 = vmatprep.subr.bf16.mxu0 0
        %1185 = vmatpush1.bf16.msra.mxu0 0
        %1186 = vmatprep.subr.bf16.mxu0 0
        %1187 = vmatpush1.bf16.msra.mxu0 %v1171
        %1188 = vmatprep.subr.bf16.mxu0 0
        %1189 = vmatpush1.bf16.msra.mxu0 %v1170
        %1190 = vmatprep.subr.bf16.mxu0 0
        %1191 = vmatpush2.bf16.msra.mxu0 0
        %1192 = vmatprep.subr.bf16.mxu0 0
        %1193 = vmatpush2.bf16.msra.mxu0 0
        %1194 = vmatprep.subr.bf16.mxu0 0
        %1195 = vmatpush2.bf16.msra.mxu0 0
        %1196 = vmatprep.subr.bf16.mxu0 0
        %1197 = vmatpush2.bf16.msra.mxu0 0
        %1198 = vmatprep.subr.bf16.mxu0 0
        %1199 = vmatpush2.bf16.msra.mxu0 0
        %1200 = vmatprep.subr.bf16.mxu0 0
        %1201 = vmatpush2.bf16.msra.mxu0 0
        %1202 = vmatprep.subr.bf16.mxu0 0
        %1203 = vmatpush2.bf16.msra.mxu0 0
        %1204 = vmatprep.subr.bf16.mxu0 0
        %1205 = vmatpush2.bf16.msra.mxu0 0
        %1206 = vmatprep.mubr.bf16.mxu0 0
        %1207 = vmatmul.mubr.bf16.gmra.mxu0 %v1078
        %v1208 = vpop.f32.mrf.mxu0
        %v1209 = vadd.f32 %v1161, %v1208
        %v1210 = vpop.f32.mrf.mxu0
        %v1211 = vpop.f32.mrf.mxu0
        %v1212 = vadd.f32 %v1161, %v1211
        %v1213 = vpop.f32.mrf.mxu0
        %1214 = vmatprep.mubr.bf16.mxu0 0
        %1215 = vmatmul.mubr.bf16.gmra.mxu0 %v1081
        %v1216 = vpop.f32.mrf.mxu0
        %v1217 = vadd.f32 %v1161, %v1216
        %v1218 = vpop.f32.mrf.mxu0
        %v1219 = vpop.f32.mrf.mxu0
        %v1220 = vadd.f32 %v1161, %v1219
        %v1221 = vpop.f32.mrf.mxu0
        %1222 = vmatprep.mubr.bf16.mxu0 0
        %1223 = vmatmul.mubr.bf16.gmra.mxu0 %v1084
        %v1224 = vpop.f32.mrf.mxu0
        %v1225 = vadd.f32 %v1161, %v1224
        %v1226 = vpop.f32.mrf.mxu0
        %v1227 = vpop.f32.mrf.mxu0
        %v1228 = vadd.f32 %v1161, %v1227
        %v1229 = vpop.f32.mrf.mxu0
        %1230 = vmatprep.mubr.bf16.mxu0 0
        %1231 = vmatmul.mubr.bf16.gmra.mxu0 %v1087
        %v1232 = vpop.f32.mrf.mxu0
        %v1233 = vadd.f32 %v1161, %v1232
        %v1234 = vpop.f32.mrf.mxu0
        %v1235 = vpop.f32.mrf.mxu0
        %v1236 = vadd.f32 %v1161, %v1235
        %v1237 = vpop.f32.mrf.mxu0
        %1238 = vdwg.mxu0
        %v1239 = vld [vmem:[%s12] sm:$0xf]
        %v1240 = vld [vmem:[%s12 + $0x4] sm:$0xf]
        %v1241 = vld [vmem:[%s12 + $0x8] sm:$0xf]
        %v1242 = vld [vmem:[%s12 + $0xc] sm:$0xf]
        %vm1243 = vcmp.gt.f32.partialorder %v1048, 0.0
        %v1244 = vadd.f32 %v1048, 1.0
        %v1245 = vmul.f32 %v1048, 1.442695
        %v1246 = vpow.pop %v1245
        %v1247 = vsel %vm1243, %v1244, %v1246
        %vm1248 = vcmp.gt.f32.partialorder %v1124, 0.0
        %vm1249 = vcmp.gt.f32.partialorder %v1127, 0.0
        %vm1250 = vcmp.gt.f32.partialorder %v1132, 0.0
        %vm1251 = vcmp.gt.f32.partialorder %v1135, 0.0
        %vm1252 = vcmp.gt.f32.partialorder %v1140, 0.0
        %vm1253 = vcmp.gt.f32.partialorder %v1143, 0.0
        %vm1254 = vcmp.gt.f32.partialorder %v1148, 0.0
        %vm1255 = vcmp.gt.f32.partialorder %v1151, 0.0
        %v1256 = vadd.f32 %v1124, 1.0
        %v1257 = vadd.f32 %v1127, 1.0
        %v1258 = vadd.f32 %v1132, 1.0
        %v1259 = vadd.f32 %v1135, 1.0
        %v1260 = vadd.f32 %v1140, 1.0
        %v1261 = vadd.f32 %v1143, 1.0
        %v1262 = vadd.f32 %v1148, 1.0
        %v1263 = vadd.f32 %v1151, 1.0
        %v1264 = vmul.f32 %v1124, 1.442695
        %v1265 = vpow.pop %v1264
        %v1266 = vmul.f32 %v1127, 1.442695
        %v1267 = vpow.pop %v1266
        %v1268 = vmul.f32 %v1132, 1.442695
        %v1269 = vpow.pop %v1268
        %v1270 = vmul.f32 %v1135, 1.442695
        %v1271 = vpow.pop %v1270
        %v1272 = vmul.f32 %v1140, 1.442695
        %v1273 = vpow.pop %v1272
        %v1274 = vmul.f32 %v1143, 1.442695
        %v1275 = vpow.pop %v1274
        %v1276 = vmul.f32 %v1148, 1.442695
        %v1277 = vpow.pop %v1276
        %v1278 = vmul.f32 %v1151, 1.442695
        %v1279 = vpow.pop %v1278
        %v1280 = vsel %vm1248, %v1256, %v1265
        %v1281 = vsel %vm1249, %v1257, %v1267
        %v1282 = vsel %vm1250, %v1258, %v1269
        %v1283 = vsel %vm1251, %v1259, %v1271
        %v1284 = vsel %vm1252, %v1260, %v1273
        %v1285 = vsel %vm1253, %v1261, %v1275
        %v1286 = vsel %vm1254, %v1262, %v1277
        %v1287 = vsel %vm1255, %v1263, %v1279
        %v1288 = vpack.c.bf16 %v1281, %v1280
        %v1289 = vpack.c.bf16 %v1283, %v1282
        %v1290 = vpack.c.bf16 %v1285, %v1284
        %v1291 = vpack.c.bf16 %v1287, %v1286
        %v1292 = vmul.f32 %v1209, 0.015625
        %v1293 = vmul.f32 %v1212, 0.015625
        %v1294 = vmul.f32 %v1217, 0.015625
        %v1295 = vmul.f32 %v1220, 0.015625
        %v1296 = vmul.f32 %v1225, 0.015625
        %v1297 = vmul.f32 %v1228, 0.015625
        %v1298 = vmul.f32 %v1233, 0.015625
        %v1299 = vmul.f32 %v1236, 0.015625
        %v1300 = vpack.c.bf16 %v1293, %v1292
        %v1301 = vpack.c.bf16 %v1295, %v1294
        %v1302 = vpack.c.bf16 %v1297, %v1296
        %v1303 = vpack.c.bf16 %v1299, %v1298
        %1304 = vxpose.xlu0.c.b16.start [1/8] %v1288, 128
        %1305 = vxpose.xlu0.c.b16.cont [2/8] %v1289, 128
        %1306 = vxpose.xlu0.c.b16.cont [3/8] %v1290, 128
        %1307 = vxpose.xlu0.c.b16.cont [4/8] %v1291, 128
        %1308 = vxpose.xlu0.c.b16.cont [5/8] 0, 128
        %1309 = vxpose.xlu0.c.b16.cont [6/8] 0, 128
        %1310 = vxpose.xlu0.c.b16.cont [7/8] 0, 128
        %1311 = vxpose.xlu0.c.b16.end [8/8] 0, 128
        %v1312 = vpop.trf.xlu0
        %v1313 = vpop.trf.xlu0
        %v1314 = vpop.trf.xlu0
        %v1315 = vpop.trf.xlu0
        %v1316 = vpop.trf.xlu0
        %v1317 = vpop.trf.xlu0
        %v1318 = vpop.trf.xlu0
        %v1319 = vpop.trf.xlu0
        %vm1320 = vcmask 523264
        %v1322 = vsel %vm1320, %v1312, 0
        %v1325 = vsel %vm1320, %v1313, 0
        %1327 = vmatprep.subr.bf16.mxu0 0
        %1328 = vmatpush1.bf16.msra.mxu0 0
        %1329 = vmatprep.subr.bf16.mxu0 0
        %1330 = vmatpush1.bf16.msra.mxu0 0
        %1331 = vmatprep.subr.bf16.mxu0 0
        %1332 = vmatpush1.bf16.msra.mxu0 0
        %1333 = vmatprep.subr.bf16.mxu0 0
        %1334 = vmatpush1.bf16.msra.mxu0 0
        %1335 = vmatprep.subr.bf16.mxu0 0
        %1336 = vmatpush1.bf16.msra.mxu0 %v1303
        %1337 = vmatprep.subr.bf16.mxu0 0
        %1338 = vmatpush1.bf16.msra.mxu0 %v1302
        %1339 = vmatprep.subr.bf16.mxu0 0
        %1340 = vmatpush1.bf16.msra.mxu0 %v1301
        %1341 = vmatprep.subr.bf16.mxu0 0
        %1342 = vmatpush1.bf16.msra.mxu0 %v1300
        %1343 = vmatprep.subr.bf16.mxu0 0
        %1344 = vmatpush2.bf16.msra.mxu0 0
        %1345 = vmatprep.subr.bf16.mxu0 0
        %1346 = vmatpush2.bf16.msra.mxu0 0
        %1347 = vmatprep.subr.bf16.mxu0 0
        %1348 = vmatpush2.bf16.msra.mxu0 0
        %1349 = vmatprep.subr.bf16.mxu0 0
        %1350 = vmatpush2.bf16.msra.mxu0 0
        %1351 = vmatprep.subr.bf16.mxu0 0
        %1352 = vmatpush2.bf16.msra.mxu0 0
        %1353 = vmatprep.subr.bf16.mxu0 0
        %1354 = vmatpush2.bf16.msra.mxu0 0
        %1355 = vmatprep.subr.bf16.mxu0 0
        %1356 = vmatpush2.bf16.msra.mxu0 0
        %1357 = vmatprep.subr.bf16.mxu0 0
        %1358 = vmatpush2.bf16.msra.mxu0 0
        %1359 = vmatprep.mubr.bf16.mxu0 0
        %1360 = vmatmul.mubr.bf16.gmra.mxu0 %v1322
        %v1361 = vpop.f32.mrf.mxu0
        %v1362 = vadd.f32 0.0, %v1361
        %v1363 = vpop.f32.mrf.mxu0
        %v1364 = vpop.f32.mrf.mxu0
        %v1365 = vadd.f32 0.0, %v1364
        %v1366 = vpop.f32.mrf.mxu0
        %1367 = vmatprep.mubr.bf16.mxu0 0
        %1368 = vmatmul.mubr.bf16.gmra.mxu0 %v1325
        %v1369 = vpop.f32.mrf.mxu0
        %v1370 = vadd.f32 0.0, %v1369
        %v1371 = vpop.f32.mrf.mxu0
        %v1372 = vpop.f32.mrf.mxu0
        %v1373 = vadd.f32 0.0, %v1372
        %v1374 = vpop.f32.mrf.mxu0
        %1375 = vdwg.mxu0
        %v1376 = vpack.c.bf16 %v1365, %v1362
        %v1377 = vpack.c.bf16 %v1373, %v1370
        %v1378 = vmul.bf16 %v1376, %v798
        %v1379 = vmul.bf16 %v1377, %v799
        %v1380 = vsel %vm527, %v1280, 0.0
        %v1381 = vsel %vm527, %v1281, 0.0
        %v1382 = vadd.f32 %v1380, %v1381
        %v1383 = vsel %vm527, %v1282, 0.0
        %v1384 = vadd.f32 %v1382, %v1383
        %v1385 = vsel %vm527, %v1283, 0.0
        %v1386 = vadd.f32 %v1384, %v1385
        %v1387 = vsel %vm527, %v1284, 0.0
        %v1388 = vadd.f32 %v1386, %v1387
        %v1389 = vsel %vm527, %v1285, 0.0
        %v1390 = vadd.f32 %v1388, %v1389
        %v1391 = vsel %vm527, %v1286, 0.0
        %v1392 = vadd.f32 %v1390, %v1391
        %v1393 = vsel %vm527, %v1287, 0.0
        %v1394 = vadd.f32 %v1392, %v1393
        %v1395 = vrot.slane %v1394, 4
        %v1396 = vadd.f32 %v1394, %v1395
        %v1397 = vrot.slane %v1396, 2
        %v1398 = vadd.f32 %v1396, %v1397
        %v1399 = vrot.slane %v1398, 1
        %v1400 = vadd.f32 %v1398, %v1399
        %v1401 = vmul.f32 %v1247, %v1400
        %v1402 = vpack.c.bf16 %v1401, %v1401
        %v1404 = vsel %vm527, %v1402, 0
        %1406 = vmatprep.subr.bf16.mxu0 0
        %1407 = vmatpush1.bf16.msra.mxu0 0
        %1408 = vmatprep.subr.bf16.mxu0 0
        %1409 = vmatpush1.bf16.msra.mxu0 0
        %1410 = vmatprep.subr.bf16.mxu0 0
        %1411 = vmatpush1.bf16.msra.mxu0 0
        %1412 = vmatprep.subr.bf16.mxu0 0
        %1413 = vmatpush1.bf16.msra.mxu0 0
        %1414 = vmatprep.subr.bf16.mxu0 0
        %1415 = vmatpush1.bf16.msra.mxu0 0
        %1416 = vmatprep.subr.bf16.mxu0 0
        %1417 = vmatpush1.bf16.msra.mxu0 0
        %1418 = vmatprep.subr.bf16.mxu0 0
        %1419 = vmatpush1.bf16.msra.mxu0 %v799
        %1420 = vmatprep.subr.bf16.mxu0 0
        %1421 = vmatpush1.bf16.msra.mxu0 %v798
        %1422 = vmatprep.subr.bf16.mxu0 0
        %1423 = vmatpush2.bf16.msra.mxu0 0
        %1424 = vmatprep.subr.bf16.mxu0 0
        %1425 = vmatpush2.bf16.msra.mxu0 0
        %1426 = vmatprep.subr.bf16.mxu0 0
        %1427 = vmatpush2.bf16.msra.mxu0 0
        %1428 = vmatprep.subr.bf16.mxu0 0
        %1429 = vmatpush2.bf16.msra.mxu0 0
        %1430 = vmatprep.subr.bf16.mxu0 0
        %1431 = vmatpush2.bf16.msra.mxu0 0
        %1432 = vmatprep.subr.bf16.mxu0 0
        %1433 = vmatpush2.bf16.msra.mxu0 0
        %1434 = vmatprep.subr.bf16.mxu0 0
        %1435 = vmatpush2.bf16.msra.mxu0 0
        %1436 = vmatprep.subr.bf16.mxu0 0
        %1437 = vmatpush2.bf16.msra.mxu0 0
        %1438 = vmatprep.mubr.bf16.mxu0 0
        %1439 = vmatmul.mubr.bf16.gmra.mxu0 %v1404
        %v1440 = vpop.f32.mrf.mxu0
        %v1441 = vadd.f32 1e-06, %v1440
        %v1442 = vpop.f32.mrf.mxu0
        %v1443 = vpop.f32.mrf.mxu0
        %v1444 = vpop.f32.mrf.mxu0
        %1445 = vdwg.mxu0
        %v1446 = vrcp.pop %v1441
        %v1447 = vmul.f32 %v1446, 64.0
        %v1448 = vpack.c.bf16 %v1247, %v1247
        %v1450 = vsel %vm527, %v1448, 0
        %1452 = vmatprep.subr.bf16.mxu0 0
        %1453 = vmatpush1.bf16.msra.mxu0 0
        %1454 = vmatprep.subr.bf16.mxu0 0
        %1455 = vmatpush1.bf16.msra.mxu0 0
        %1456 = vmatprep.subr.bf16.mxu0 0
        %1457 = vmatpush1.bf16.msra.mxu0 0
        %1458 = vmatprep.subr.bf16.mxu0 0
        %1459 = vmatpush1.bf16.msra.mxu0 0
        %1460 = vmatprep.subr.bf16.mxu0 0
        %1461 = vmatpush1.bf16.msra.mxu0 0
        %1462 = vmatprep.subr.bf16.mxu0 0
        %1463 = vmatpush1.bf16.msra.mxu0 0
        %1464 = vmatprep.subr.bf16.mxu0 0
        %1465 = vmatpush1.bf16.msra.mxu0 %v1379
        %1466 = vmatprep.subr.bf16.mxu0 0
        %1467 = vmatpush1.bf16.msra.mxu0 %v1378
        %1468 = vmatprep.subr.bf16.mxu0 0
        %1469 = vmatpush2.bf16.msra.mxu0 0
        %1470 = vmatprep.subr.bf16.mxu0 0
        %1471 = vmatpush2.bf16.msra.mxu0 0
        %1472 = vmatprep.subr.bf16.mxu0 0
        %1473 = vmatpush2.bf16.msra.mxu0 0
        %1474 = vmatprep.subr.bf16.mxu0 0
        %1475 = vmatpush2.bf16.msra.mxu0 0
        %1476 = vmatprep.subr.bf16.mxu0 0
        %1477 = vmatpush2.bf16.msra.mxu0 0
        %1478 = vmatprep.subr.bf16.mxu0 0
        %1479 = vmatpush2.bf16.msra.mxu0 0
        %1480 = vmatprep.subr.bf16.mxu0 0
        %1481 = vmatpush2.bf16.msra.mxu0 0
        %1482 = vmatprep.subr.bf16.mxu0 0
        %1483 = vmatpush2.bf16.msra.mxu0 0
        %1484 = vmatprep.mubr.bf16.mxu0 0
        %1485 = vmatmul.mubr.bf16.gmra.mxu0 %v1450
        %v1486 = vpop.f32.mrf.mxu0
        %v1487 = vadd.f32 0.0, %v1486
        %v1488 = vpop.f32.mrf.mxu0
        %v1489 = vpop.f32.mrf.mxu0
        %v1490 = vpop.f32.mrf.mxu0
        %1491 = vdwg.mxu0
        %v1492 = vmul.f32 %v1487, %v1447
        %v1493 = vpack.c.bf16 %v1492, %v1492
        %v1498 = vunpack.c.l.b16 %v1239
        %v1499 = vunpack.c.l.b16 %v1240
        %v1500 = vunpack.c.l.b16 %v1241
        %v1501 = vunpack.c.l.b16 %v1242
        %v1502 = vpack.c.b16 %v1499, %v1498
        %v1503 = vpack.c.b16 %v1501, %v1500
        %v1507 = vsel %vm527, %v1493, 0
        %1509 = vmatprep.subr.bf16.mxu0 0
        %1510 = vmatpush1.bf16.msra.mxu0 0
        %1511 = vmatprep.subr.bf16.mxu0 0
        %1512 = vmatpush1.bf16.msra.mxu0 0
        %1513 = vmatprep.subr.bf16.mxu0 0
        %1514 = vmatpush1.bf16.msra.mxu0 0
        %1515 = vmatprep.subr.bf16.mxu0 0
        %1516 = vmatpush1.bf16.msra.mxu0 0
        %1517 = vmatprep.subr.bf16.mxu0 0
        %1518 = vmatpush1.bf16.msra.mxu0 0
        %1519 = vmatprep.subr.bf16.mxu0 0
        %1520 = vmatpush1.bf16.msra.mxu0 0
        %1521 = vmatprep.subr.bf16.mxu0 0
        %1522 = vmatpush1.bf16.msra.mxu0 %v1503
        %1523 = vmatprep.subr.bf16.mxu0 0
        %1524 = vmatpush1.bf16.msra.mxu0 %v1502
        %1525 = vmatprep.subr.bf16.mxu0 0
        %1526 = vmatpush2.bf16.msra.mxu0 0
        %1527 = vmatprep.subr.bf16.mxu0 0
        %1528 = vmatpush2.bf16.msra.mxu0 0
        %1529 = vmatprep.subr.bf16.mxu0 0
        %1530 = vmatpush2.bf16.msra.mxu0 0
        %1531 = vmatprep.subr.bf16.mxu0 0
        %1532 = vmatpush2.bf16.msra.mxu0 0
        %1533 = vmatprep.subr.bf16.mxu0 0
        %1534 = vmatpush2.bf16.msra.mxu0 0
        %1535 = vmatprep.subr.bf16.mxu0 0
        %1536 = vmatpush2.bf16.msra.mxu0 0
        %1537 = vmatprep.subr.bf16.mxu0 0
        %1538 = vmatpush2.bf16.msra.mxu0 0
        %1539 = vmatprep.subr.bf16.mxu0 0
        %1540 = vmatpush2.bf16.msra.mxu0 0
        %1541 = vmatprep.mubr.bf16.mxu0 0
        %1542 = vmatmul.mubr.bf16.gmra.mxu0 %v1507
        %v1543 = vpop.f32.mrf.mxu0
        %v1544 = vadd.f32 0.0, %v1543
        %v1545 = vpop.f32.mrf.mxu0
        %v1546 = vpop.f32.mrf.mxu0
        %v1547 = vpop.f32.mrf.mxu0
        %1548 = vdwg.mxu0
        %v1549 = vadd.f32 %v964, %v1544
        %v1550 = vsel %vm527, %v1549, 0.0
        %1551 = vadd.xlane.f32.xlu0 %v1550
        %v1552 = vpop.xlane.xlu0 %1551
        %v1553 = vmul.f32 %v1552, %v531
        %v1554 = vsub.f32 %v1549, %v1553
        %v1555 = vmul.f32 %v1554, %v1554
        %v1556 = vsel %vm527, %v1555, 0.0
        %1557 = vadd.xlane.f32.xlu0 %v1556
        %v1558 = vpop.xlane.xlu0 %1557
        %v1559 = vmul.f32 %v1558, %v531
        %v1560 = vadd.f32 %v1559, 1e-05
        %v1561 = vrsqrt.pop %v1560
        %v1562 = vmul.f32 %v1554, %v1561
        %v1563 = vlaneseq
        %v1564 = vshrl.u32 %v1563, 7
        %v1565 = vsub.s32 4, %v1564
        %v1566 = vrot.slane %v524, %v1565
        %v1567 = vmul.f32 %v1562, %v1566
        %v1568 = vlaneseq
        %v1569 = vshrl.u32 %v1568, 7
        %v1570 = vsub.s32 5, %v1569
        %v1571 = vrot.slane %v524, %v1570
        %v1572 = vadd.f32 %v1567, %v1571
        %v1573 = vpack.c.bf16 %v1572, %v1572
        %v1574 = vld [vmem:[%s13] sm:$0xf]
        %v1575 = vld [vmem:[%s13 + $0x4] sm:$0xf]
        %v1576 = vld [vmem:[%s13 + $0x8] sm:$0xf]
        %v1577 = vld [vmem:[%s13 + $0xc] sm:$0xf]
        %v1582 = vunpack.c.l.b16 %v1574
        %v1583 = vunpack.c.l.b16 %v1575
        %v1584 = vunpack.c.l.b16 %v1576
        %v1585 = vunpack.c.l.b16 %v1577
        %v1586 = vpack.c.b16 %v1583, %v1582
        %v1587 = vpack.c.b16 %v1585, %v1584
        %v1591 = vsel %vm527, %v1573, 0
        %1593 = vmatprep.subr.bf16.mxu0 0
        %1594 = vmatpush1.bf16.msra.mxu0 0
        %1595 = vmatprep.subr.bf16.mxu0 0
        %1596 = vmatpush1.bf16.msra.mxu0 0
        %1597 = vmatprep.subr.bf16.mxu0 0
        %1598 = vmatpush1.bf16.msra.mxu0 0
        %1599 = vmatprep.subr.bf16.mxu0 0
        %1600 = vmatpush1.bf16.msra.mxu0 0
        %1601 = vmatprep.subr.bf16.mxu0 0
        %1602 = vmatpush1.bf16.msra.mxu0 0
        %1603 = vmatprep.subr.bf16.mxu0 0
        %1604 = vmatpush1.bf16.msra.mxu0 0
        %1605 = vmatprep.subr.bf16.mxu0 0
        %1606 = vmatpush1.bf16.msra.mxu0 %v1587
        %1607 = vmatprep.subr.bf16.mxu0 0
        %1608 = vmatpush1.bf16.msra.mxu0 %v1586
        %1609 = vmatprep.subr.bf16.mxu0 0
        %1610 = vmatpush2.bf16.msra.mxu0 0
        %1611 = vmatprep.subr.bf16.mxu0 0
        %1612 = vmatpush2.bf16.msra.mxu0 0
        %1613 = vmatprep.subr.bf16.mxu0 0
        %1614 = vmatpush2.bf16.msra.mxu0 0
        %1615 = vmatprep.subr.bf16.mxu0 0
        %1616 = vmatpush2.bf16.msra.mxu0 0
        %1617 = vmatprep.subr.bf16.mxu0 0
        %1618 = vmatpush2.bf16.msra.mxu0 0
        %1619 = vmatprep.subr.bf16.mxu0 0
        %1620 = vmatpush2.bf16.msra.mxu0 0
        %1621 = vmatprep.subr.bf16.mxu0 0
        %1622 = vmatpush2.bf16.msra.mxu0 0
        %1623 = vmatprep.subr.bf16.mxu0 0
        %1624 = vmatpush2.bf16.msra.mxu0 0
        %1625 = vmatprep.mubr.bf16.mxu0 0
        %1626 = vmatmul.mubr.bf16.gmra.mxu0 %v1591
        %v1627 = vpop.f32.mrf.mxu0
        %v1628 = vadd.f32 0.0, %v1627
        %v1629 = vpop.f32.mrf.mxu0
        %v1630 = vpop.f32.mrf.mxu0
        %v1631 = vpop.f32.mrf.mxu0
        %1632 = vdwg.mxu0
        %v1633 = vmax.f32 %v1628, 0.0
        %v1634 = vpack.c.bf16 %v1633, %v1633
        %v1635 = vld [vmem:[%s14] sm:$0xf]
        %v1636 = vld [vmem:[%s14 + $0x4] sm:$0xf]
        %v1637 = vld [vmem:[%s14 + $0x8] sm:$0xf]
        %v1638 = vld [vmem:[%s14 + $0xc] sm:$0xf]
        %v1639 = vld [vmem:[%s14 + $0x10] sm:$0xf]
        %v1640 = vld [vmem:[%s14 + $0x14] sm:$0xf]
        %v1641 = vld [vmem:[%s14 + $0x18] sm:$0xf]
        %v1642 = vld [vmem:[%s14 + $0x1c] sm:$0xf]
        %v1651 = vunpack.c.l.b16 %v1635
        %v1652 = vunpack.c.l.b16 %v1636
        %v1653 = vunpack.c.l.b16 %v1637
        %v1654 = vunpack.c.l.b16 %v1638
        %v1655 = vunpack.c.l.b16 %v1639
        %v1656 = vunpack.c.l.b16 %v1640
        %v1657 = vunpack.c.l.b16 %v1641
        %v1658 = vunpack.c.l.b16 %v1642
        %v1659 = vpack.c.b16 %v1652, %v1651
        %v1660 = vpack.c.b16 %v1654, %v1653
        %v1661 = vpack.c.b16 %v1656, %v1655
        %v1662 = vpack.c.b16 %v1658, %v1657
        %v1668 = vsel %vm1320, %v1634, 0
        %1670 = vmatprep.subr.bf16.mxu0 0
        %1671 = vmatpush1.bf16.msra.mxu0 0
        %1672 = vmatprep.subr.bf16.mxu0 0
        %1673 = vmatpush1.bf16.msra.mxu0 0
        %1674 = vmatprep.subr.bf16.mxu0 0
        %1675 = vmatpush1.bf16.msra.mxu0 0
        %1676 = vmatprep.subr.bf16.mxu0 0
        %1677 = vmatpush1.bf16.msra.mxu0 0
        %1678 = vmatprep.subr.bf16.mxu0 0
        %1679 = vmatpush1.bf16.msra.mxu0 %v1662
        %1680 = vmatprep.subr.bf16.mxu0 0
        %1681 = vmatpush1.bf16.msra.mxu0 %v1661
        %1682 = vmatprep.subr.bf16.mxu0 0
        %1683 = vmatpush1.bf16.msra.mxu0 %v1660
        %1684 = vmatprep.subr.bf16.mxu0 0
        %1685 = vmatpush1.bf16.msra.mxu0 %v1659
        %1686 = vmatprep.subr.bf16.mxu0 0
        %1687 = vmatpush2.bf16.msra.mxu0 0
        %1688 = vmatprep.subr.bf16.mxu0 0
        %1689 = vmatpush2.bf16.msra.mxu0 0
        %1690 = vmatprep.subr.bf16.mxu0 0
        %1691 = vmatpush2.bf16.msra.mxu0 0
        %1692 = vmatprep.subr.bf16.mxu0 0
        %1693 = vmatpush2.bf16.msra.mxu0 0
        %1694 = vmatprep.subr.bf16.mxu0 0
        %1695 = vmatpush2.bf16.msra.mxu0 0
        %1696 = vmatprep.subr.bf16.mxu0 0
        %1697 = vmatpush2.bf16.msra.mxu0 0
        %1698 = vmatprep.subr.bf16.mxu0 0
        %1699 = vmatpush2.bf16.msra.mxu0 0
        %1700 = vmatprep.subr.bf16.mxu0 0
        %1701 = vmatpush2.bf16.msra.mxu0 0
        %1702 = vmatprep.mubr.bf16.mxu0 0
        %1703 = vmatmul.mubr.bf16.gmra.mxu0 %v1668
        %v1704 = vpop.f32.mrf.mxu0
        %v1705 = vadd.f32 0.0, %v1704
        %v1706 = vpop.f32.mrf.mxu0
        %v1707 = vpop.f32.mrf.mxu0
        %v1708 = vpop.f32.mrf.mxu0
        %1709 = vdwg.mxu0
        %v1710 = vadd.f32 %v1549, %v1705
        %1711 = vst.msk [vmem:[%s500] sm:$0xff] %vm527, %v1710
        %s1712 = sand.u32 %s362, 1
        %s1713 = scalar_lea.sflag [#allocation3], %s1712
        %s1714 = sand.u32 %s362, 1
        %s1715 = smul.addr %s1714, 8
        %s1716 = scalar_lea.vmem [#allocation2], %s1715
        // Predicated region
        $region81: #{decoder_layer_forward.1} parent=79 // pred_check
          %p1717 = pneg %p372
        $region82: #{decoder_layer_forward.1} parent=79 // pred_check_branch
          %1719 = sbr.rel (%p1717) target = $region84
        $region83: #{decoder_layer_forward.1} parent=79 // pred_region
          %s1721 = ssub.s32 128, 128
          %1722 = vsyncadd %s1713, %s1721
          %s1723 = smul.addr %s29, 128
          %s1724 = scalar_lea.hbm %s15, %s1723
          %s1726 = sshll.u32 %s1716, 4
          %s1727 = int_to_ptr.vmem [resolvable:$true] %s1726
          %1729 = dma.vmem_to_hbm [thread:$0]  %s1727, 128, %s1724, %s1713
        $region84: #{decoder_layer_forward.1} parent=79 // pred_fallthru
          _
      $region80: #{decoder_layer_forward.1} parent=5 // pred_fallthru
        _
      %p1730 = scmp.le.s32.totalorder 2, %s24
      // Predicated region
      $region85: #{decoder_layer_forward.1} parent=5 // pred_check
        %p1731 = pneg %p1730
      $region86: #{decoder_layer_forward.1} parent=5 // pred_check_branch
        %1733 = sbr.rel (%p1731) target = $region88
      $region87: #{decoder_layer_forward.1} parent=5 // pred_region
        %s1734 = ssub.s32 %s24, 2
        // Predicated region
        $region89: #{decoder_layer_forward.1} parent=87 // pred_check
          %p1735 = pneg %p378
        $region90: #{decoder_layer_forward.1} parent=87 // pred_check_branch
          %1737 = sbr.rel (%p1735) target = $region92
        $region91: #{decoder_layer_forward.1} parent=87 // pred_region
          %s1738 = sand.u32 %s363, 1
          %s1739 = scalar_lea.sflag [#allocation3], %s1738
          %s1740 = sand.u32 %s363, 1
          %s1741 = smul.addr %s1740, 8
          %s1742 = scalar_lea.vmem [#allocation2], %s1741
          %1743 = dma.done %s1739, 128
        $region92: #{decoder_layer_forward.1} parent=87 // pred_fallthru
          _
      $region88: #{decoder_layer_forward.1} parent=5 // pred_fallthru
        _
    $region6: #{decoder_layer_forward.1} parent=1 // loop_footer
      %s28 = sadd.s32 1, %s24
    $region7: #{decoder_layer_forward.1} parent=1 // loop_footer_branch
      %23 = sbr.rel target = $region3
    $region8: #{decoder_layer_forward.1} parent=1 // loop_exit
      _
    %1744 = vsyncpa [#allocation3], 1
    %s1745 = scalar_lea.sflag [#allocation3], 1
    %1746 = vsyncpa %s1745, 1

</llo_original>
